<compile_context>
chip_gen: v6e
topology: v6e:2x2x1
jax: 0.10.0
libtpu: 0.0.40
codegen_flags: <defaults>
</compile_context>

<pallas_src>
import functools
import math

import jax
import jax.numpy as jnp
from jax import lax
from jax.experimental import pallas as pl
from jax.experimental.pallas import tpu as pltpu

LN_EPS = 1e-5


def _layer_norm(v, g, b):
    mu = jnp.mean(v, axis=-1, keepdims=True)
    var = jnp.mean(jnp.square(v - mu), axis=-1, keepdims=True)
    return (v - mu) * lax.rsqrt(var + LN_EPS) * g + b


# --------------- kernel 1: LayerNorm + fused QKV projection (head-major out) ---------------

def _qkv_kernel(num_heads, compute_dtype,
                x_ref, ln1_ref, wqkv_ref, bqkv_ref,
                q_ref, k_ref, v_ref):
    x = x_ref[0]                                            # (TS, D) f32
    D = x.shape[-1]
    H = num_heads
    hd = D // H
    z = _layer_norm(x, ln1_ref[0], ln1_ref[1])              # f32
    # One lane-dense MXU matmul with N = 3D instead of three N = D matmuls.
    qkv = jnp.dot(z.astype(compute_dtype), wqkv_ref[...],
                  preferred_element_type=jnp.float32) + bqkv_ref[0]     # (TS, 3D) f32
    # Fold the 1/sqrt(hd) softmax scale into q once per token (not per KV tile).
    q_scaled = qkv[:, :D] * (1.0 / math.sqrt(hd))
    # Head-major bf16 stores -> no XLA repack between the two pallas_calls.
    # TODO(synk): pad hd to 128 (or pack heads) to avoid masked partial stores when
    #             head_dim % 128 != 0.
    for h in range(H):
        c = h * hd
        q_ref[0, h] = q_scaled[:, c:c + hd].astype(compute_dtype)
        k_ref[0, h] = qkv[:, D + c:D + c + hd].astype(compute_dtype)
        v_ref[0, h] = qkv[:, 2 * D + c:2 * D + c + hd].astype(compute_dtype)


# ------ kernel 2: flash attention + out-proj + residual + F-tiled FFN + residual ------

def _attn_ffn_kernel(num_heads, n_kv, compute_dtype,
                     x_ref, qh_ref, kh_ref, vh_ref,
                     wo_ref, bo_ref, ln2_ref, w1_ref, b1_ref, w2_ref, b2_ref,
                     out_ref,
                     m_sc, l_sc, acc_sc, attn_sc, z2_sc):
    # Inner "arbitrary" axis: steps [0, n_kv) are flash KV steps, steps >= n_kv are
    # FFN F-chunk steps that accumulate into the resident output block.
    i = pl.program_id(2)

    @pl.when(i == 0)
    def _init():
        m_sc[...] = jnp.full_like(m_sc, -jnp.inf)
        l_sc[...] = jnp.zeros_like(l_sc)
        acc_sc[...] = jnp.zeros_like(acc_sc)

    @pl.when(i < n_kv)
    def _flash_step():
        qh = qh_ref[0]                                      # (H, TS, hd), pre-scaled bf16
        kh = kh_ref[0]                                      # (H, TK, hd) bf16
        vh = vh_ref[0]
        s = jnp.einsum("hqd,hkd->hqk", qh, kh,
                       preferred_element_type=jnp.float32)            # (H, TS, TK) f32
        m_prev = m_sc[...]
        m_new = jnp.maximum(m_prev, jnp.max(s, axis=-1, keepdims=True))
        alpha = jnp.exp(m_prev - m_new)
        p = jnp.exp(s - m_new)
        l_sc[...] = alpha * l_sc[...] + jnp.sum(p, axis=-1, keepdims=True)
        acc_sc[...] = alpha * acc_sc[...] + jnp.einsum(
            "hqk,hkd->hqd", p.astype(compute_dtype), vh,
            preferred_element_type=jnp.float32)                        # (H, TS, hd) f32
        m_sc[...] = m_new

    @pl.when(i == n_kv - 1)
    def _attn_finalize():
        x = x_ref[0]                                        # (TS, D) f32
        D = x.shape[-1]
        H = num_heads
        hd = D // H
        # Denominator folded into the O(H*TS*hd) output (EUP reciprocal), not into p.
        o = acc_sc[...] * pl.reciprocal(l_sc[...], approx=True)
        # Merge heads at static column offsets into a bf16 scratch, then one K=D matmul.
        for h in range(H):
            attn_sc[:, h * hd:(h + 1) * hd] = o[h].astype(compute_dtype)
        attn = jnp.dot(attn_sc[...], wo_ref[...],
                       preferred_element_type=jnp.float32) + bo_ref[0]
        x1 = x + attn                                       # first residual
        z2_sc[...] = _layer_norm(x1, ln2_ref[0], ln2_ref[1]).astype(compute_dtype)
        # Resident output block doubles as the FFN accumulator: seed with residual + b2.
        out_ref[0] = x1 + b2_ref[0]

    @pl.when(i >= n_kv)
    def _ffn_step():
        h1 = jnp.dot(z2_sc[...], w1_ref[...],
                     preferred_element_type=jnp.float32) + b1_ref[0]    # (TS, TF) f32
        # TODO(synk): reference PositionwiseFeedForward activation not shown; ReLU assumed.
        h1 = jnp.maximum(h1, 0.0)
        out_ref[0] += jnp.dot(h1.astype(compute_dtype), w2_ref[...],
                              preferred_element_type=jnp.float32)


# ------------------------------------ wrapper ------------------------------------------

def _largest_tile(n, target, unit):
    """Largest multiple-of-`unit` divisor of n that is <= target (else n itself)."""
    if n <= target:
        return n
    t0 = target - target % unit
    for t in range(t0, unit - 1, -unit):
        if n % t == 0:
            return t
    return n   # TODO(synk): pad + mask instead of falling back to an untiled axis.


def _vmem_budget_bytes():
    """~75% of physical VMEM (96 MiB v5e/v6e, 48 MiB v7x); conservative fallback."""
    try:
        cap = int(pltpu.get_tpu_info().vmem_capacity_bytes)
        return max(32 * 2**20, (cap * 3) // 4)
    except Exception:
        return 64 * 2**20


def _spec(shape, index_map, single_buffer=False):
    """BlockSpec; optionally single-buffered (for grid-invariant weights)."""
    if single_buffer and hasattr(pl, "Buffered"):
        return pl.BlockSpec(shape, index_map, pipeline_mode=pl.Buffered(1))
    return pl.BlockSpec(shape, index_map)


def _forward(x, params, num_heads, compute_dtype, weight_buffers):
    B, S, D = x.shape
    F = params["w1"].shape[1]
    H = num_heads
    assert D % H == 0
    hd = D // H
    wbytes = jnp.dtype(compute_dtype).itemsize
    sb = weight_buffers is not None
    budget = _vmem_budget_bytes()

    # ---- tile selection ----
    TS = _largest_tile(S, 512 if budget >= 80 * 2**20 else 256, 8)
    if B * (S // TS) < 2 and TS % 16 == 0:
        TS //= 2                                 # keep both v7x TensorCores busy at B=1
    n_seq = S // TS
    TK = _largest_tile(S, 256, 8)                # flash KV streaming tile
    n_kv = S // TK
    tf_cap = max(128, min(F, (budget // (12 * D * wbytes)) // 128 * 128))
    TF = _largest_tile(F, tf_cap, 128)           # FFN F-chunk tile
    n_f = F // TF
    n_inner = n_kv + n_f

    # ---- host-side parameter packing ----
    wqkv = jnp.concatenate([params["wq"], params["wk"], params["wv"]],
                           axis=1).astype(compute_dtype)                  # (D, 3D)
    bqkv = jnp.concatenate([params["bq"], params["bk"], params["bv"]],
                           axis=1).astype(jnp.float32)                    # (1, 3D)
    ln1 = jnp.concatenate([params["ln1_g"], params["ln1_b"]], axis=0)     # (2, D)
    ln2 = jnp.concatenate([params["ln2_g"], params["ln2_b"]], axis=0)     # (2, D)
    wo = params["wo"].astype(compute_dtype)
    w1 = params["w1"].astype(compute_dtype)
    w2 = params["w2"].astype(compute_dtype)
    bo, b1, b2 = params["bo"], params["b1"], params["b2"]

    # ------------------ call 1: LayerNorm + fused QKV (head-major out) ------------------
    cost1 = pl.CostEstimate(
        flops=int(2 * B * S * D * 3 * D + 10 * B * S * D),
        transcendentals=int(B * S),
        bytes_accessed=int(B * S * D * 4 + 3 * B * S * D * wbytes
                           + 3 * D * D * wbytes + 5 * D * 4),
    )
    q, k, v = pl.pallas_call(
        functools.partial(_qkv_kernel, H, compute_dtype),
        grid=(B, n_seq),
        in_specs=[
            pl.BlockSpec((1, TS, D), lambda b, s: (b, s, 0)),    # x tile
            _spec((2, D), lambda b, s: (0, 0), sb),              # ln1 gamma/beta
            _spec((D, 3 * D), lambda b, s: (0, 0), sb),          # fused qkv weight
            _spec((1, 3 * D), lambda b, s: (0, 0), sb),          # fused qkv bias
        ],
        out_specs=[pl.BlockSpec((1, H, TS, hd), lambda b, s: (b, 0, s, 0))] * 3,
        out_shape=[jax.ShapeDtypeStruct((B, H, S, hd), compute_dtype)] * 3,
        compiler_params=pltpu.CompilerParams(
            dimension_semantics=("parallel", "parallel"),
            vmem_limit_bytes=budget),
        cost_estimate=cost1,
    )(x, ln1, wqkv, bqkv)

    # ---------- call 2: flash attention + out-proj + residual + F-tiled FFN -------------
    def kv_map(b, s, i):
        return (b, 0, jnp.minimum(i, n_kv - 1), 0)

    def f_col_map(b, s, i):
        return (0, jnp.clip(i - n_kv, 0, n_f - 1))

    def f_row_map(b, s, i):
        return (jnp.clip(i - n_kv, 0, n_f - 1), 0)

    cost2 = pl.CostEstimate(
        flops=int(4 * B * H * S * S * hd + 2 * B * S * D * D + 4 * B * S * D * F),
        transcendentals=int(B * H * S * S + B * H * S + B * S),
        bytes_accessed=int(2 * B * S * D * 4                          # x in, out
                           + (1 + 2 * n_seq) * B * S * D * wbytes     # q once, k/v per seq tile
                           + D * D * wbytes
                           + B * n_seq * 2 * D * F * wbytes           # streamed FFN weights
                           + (4 * D + F) * 4),
    )
    out = pl.pallas_call(
        functools.partial(_attn_ffn_kernel, H, n_kv, compute_dtype),
        grid=(B, n_seq, n_inner),
        in_specs=[
            pl.BlockSpec((1, TS, D), lambda b, s, i: (b, s, 0)),         # x (residual)
            pl.BlockSpec((1, H, TS, hd), lambda b, s, i: (b, 0, s, 0)),  # q, head-major
            pl.BlockSpec((1, H, TK, hd), kv_map),                        # k tile (streamed)
            pl.BlockSpec((1, H, TK, hd), kv_map),                        # v tile (streamed)
            _spec((D, D), lambda b, s, i: (0, 0), sb),                   # wo
            _spec((1, D), lambda b, s, i: (0, 0), sb),                   # bo
            _spec((2, D), lambda b, s, i: (0, 0), sb),                   # ln2 gamma/beta
            pl.BlockSpec((D, TF), f_col_map),                            # w1 chunk (streamed)
            pl.BlockSpec((1, TF), f_col_map),                            # b1 chunk
            pl.BlockSpec((TF, D), f_row_map),                            # w2 chunk (streamed)
            _spec((1, D), lambda b, s, i: (0, 0), sb),                   # b2
        ],
        out_specs=pl.BlockSpec((1, TS, D), lambda b, s, i: (b, s, 0)),
        out_shape=jax.ShapeDtypeStruct((B, S, D), jnp.float32),
        scratch_shapes=[
            pltpu.VMEM((H, TS, 1), jnp.float32),      # running max
            pltpu.VMEM((H, TS, 1), jnp.float32),      # running sum
            pltpu.VMEM((H, TS, hd), jnp.float32),     # unnormalized attention accumulator
            pltpu.VMEM((TS, D), compute_dtype),       # merged-heads buffer (bf16)
            pltpu.VMEM((TS, D), compute_dtype),       # LN2 activation for FFN chunks (bf16)
        ],
        compiler_params=pltpu.CompilerParams(
            dimension_semantics=("parallel", "parallel", "arbitrary"),
            vmem_limit_bytes=budget),
        cost_estimate=cost2,
    )(x, q, k, v, wo, bo, ln2, w1, b1, w2, b2)

    # enc_attn_cache is None (use_encoder_attn=False); cache = projected k/v, head-major.
    return out, (k, v), None


def transformer_layer(x, params, num_heads, compute_dtype=jnp.bfloat16):
    """Pallas TransformerLayer forward. x: (B, S, D) float32."""
    try:
        # Single-buffer the grid-invariant weights (pl.Buffered(1)): avoids a second
        # full VMEM copy of wqkv/wo/ln/bias buffers (v7x 64 MiB critical).
        return _forward(x, params, num_heads, compute_dtype, weight_buffers=1)
    except Exception:
        # TODO(synk): BlockSpec.pipeline_mode / pl.Buffered not supported by this
        #             jax/libtpu; fall back to default double-buffered weight specs.
        return _forward(x, params, num_heads, compute_dtype, weight_buffers=None)


# ------------------------------------ reference ---------------------------------------

def reference(x, p, num_heads, compute_dtype=jnp.float32):
    """Pure-JAX reference; optionally applies the same matmul-input casts as the kernel."""
    B, S, D = x.shape
    hd = D // num_heads
    cdt = compute_dtype

    def ln(v, g, b):
        mu = v.mean(-1, keepdims=True)
        var = jnp.square(v - mu).mean(-1, keepdims=True)
        return (v - mu) * lax.rsqrt(var + LN_EPS) * g + b

    def mm(a, w):
        return jnp.dot(a.astype(cdt), w.astype(cdt), preferred_element_type=jnp.float32)

    z = ln(x, p["ln1_g"][0], p["ln1_b"][0])
    q = mm(z, p["wq"]) + p["bq"][0]
    k = mm(z, p["wk"]) + p["bk"][0]
    v = mm(z, p["wv"]) + p["bv"][0]
    qh = q.reshape(B, S, num_heads, hd).transpose(0, 2, 1, 3)
    kh = k.reshape(B, S, num_heads, hd).transpose(0, 2, 1, 3)
    vh = v.reshape(B, S, num_heads, hd).transpose(0, 2, 1, 3)
    scores = jnp.einsum("bhqd,bhkd->bhqk", qh.astype(cdt), kh.astype(cdt),
                        preferred_element_type=jnp.float32) / math.sqrt(hd)
    pr = jax.nn.softmax(scores, axis=-1)
    o = jnp.einsum("bhqk,bhkd->bhqd", pr.astype(cdt), vh.astype(cdt),
                   preferred_element_type=jnp.float32)
    o = o.transpose(0, 2, 1, 3).reshape(B, S, D)
    attn = mm(o, p["wo"]) + p["bo"][0]
    x1 = x + attn
    z2 = ln(x1, p["ln2_g"][0], p["ln2_b"][0])
    ff = mm(jnp.maximum(mm(z2, p["w1"]) + p["b1"][0], 0.0), p["w2"]) + p["b2"][0]
    return x1 + ff, k, v


def init_params(key, hidden_dim, expansion_ratio):
    D = hidden_dim
    F = int(hidden_dim * expansion_ratio)
    ks = jax.random.split(key, 12)
    n = lambda k, shape, s=0.02: (s * jax.random.normal(k, shape)).astype(jnp.float32)
    return {
        "ln1_g": jnp.ones((1, D), jnp.float32) + n(ks[0], (1, D)),
        "ln1_b": n(ks[1], (1, D)),
        "wq": n(ks[2], (D, D)), "bq": n(ks[3], (1, D)),
        "wk": n(ks[4], (D, D)), "bk": n(ks[5], (1, D)),
        "wv": n(ks[6], (D, D)), "bv": n(ks[7], (1, D)),
        "wo": n(ks[8], (D, D)), "bo": jnp.zeros((1, D), jnp.float32),
        "ln2_g": jnp.ones((1, D), jnp.float32) + n(ks[9], (1, D)),
        "ln2_b": n(ks[10], (1, D)),
        "w1": n(ks[11], (D, F)), "b1": jnp.zeros((1, F), jnp.float32),
        "w2": n(jax.random.fold_in(key, 99), (F, D)),
        "b2": jnp.zeros((1, D), jnp.float32),
    }


if __name__ == "__main__":
    B, S, D, H = 2, 8, 32, 4          # batch, seq, hidden_dim, num_attn_heads
    expansion_ratio = 4
    hd = D // H

    root = jax.random.PRNGKey(0)
    kx, kp = jax.random.split(root)
    x = jax.random.normal(kx, (B, S, D), dtype=jnp.float32)
    params = init_params(kp, D, expansion_ratio)

    out, (k_cache, v_cache), enc_cache = transformer_layer(x, params, H)
    jax.block_until_ready(out)
    jax.block_until_ready(k_cache)
    jax.block_until_ready(v_cache)

    assert out.shape == (B, S, D)
    assert k_cache.shape == (B, H, S, hd) and v_cache.shape == (B, H, S, hd)
    assert enc_cache is None

    # Primary check: reference using the same bf16-at-MXU / f32-accumulate numerics.
    ref_out, ref_k, ref_v = reference(x, params, H, compute_dtype=jnp.bfloat16)
    ref_kh = ref_k.reshape(B, S, H, hd).transpose(0, 2, 1, 3)
    ref_vh = ref_v.reshape(B, S, H, hd).transpose(0, 2, 1, 3)
    assert jnp.allclose(out, ref_out, atol=5e-3, rtol=5e-3), "output mismatch (bf16 ref)"
    assert jnp.allclose(k_cache.astype(jnp.float32), ref_kh, atol=5e-3, rtol=5e-3), \
        "k cache mismatch"
    assert jnp.allclose(v_cache.astype(jnp.float32), ref_vh, atol=5e-3, rtol=5e-3), \
        "v cache mismatch"

    # Sanity check: still close to the pure-f32 reference.
    f32_out, _, _ = reference(x, params, H, compute_dtype=jnp.float32)
    assert jnp.allclose(out, f32_out, atol=3e-2, rtol=3e-2), "output mismatch (f32 ref)"

    print("KERNEL_OK")
</pallas_src>

<mosaic_0001>
module attributes {stable_mosaic.version = 11 : i64} {
  func.func @_qkv_kernel(%arg0: i32, %arg1: i32, %arg2: memref<1x8x32xf32, #tpu.memory_space<vmem>>, %arg3: memref<2x32xf32, #tpu.memory_space<vmem>>, %arg4: memref<32x96xbf16, #tpu.memory_space<vmem>>, %arg5: memref<1x96xf32, #tpu.memory_space<vmem>>, %arg6: memref<1x4x8x8xbf16, #tpu.memory_space<vmem>>, %arg7: memref<1x4x8x8xbf16, #tpu.memory_space<vmem>>, %arg8: memref<1x4x8x8xbf16, #tpu.memory_space<vmem>>) attributes {dimension_semantics = [#tpu.dimension_semantics<parallel>, #tpu.dimension_semantics<parallel>], iteration_bounds = array<i64: 2, 1>, scalar_prefetch = 0 : i64, scratch_operands = 0 : i64, tpu.core_type = #tpu.core_type<tc>, window_params = [{transform_indices = @transform_0, window_bounds = array<i64: 1, 8, 32>}, {pipeline_mode = #tpu.pipeline_mode<synchronous>, transform_indices = @transform_1, window_bounds = array<i64: 2, 32>}, {pipeline_mode = #tpu.pipeline_mode<synchronous>, transform_indices = @transform_2, window_bounds = array<i64: 32, 96>}, {pipeline_mode = #tpu.pipeline_mode<synchronous>, transform_indices = @transform_3, window_bounds = array<i64: 1, 96>}, {transform_indices = @transform_4, window_bounds = array<i64: 1, 4, 8, 8>}, {transform_indices = @transform_5, window_bounds = array<i64: 1, 4, 8, 8>}, {transform_indices = @transform_6, window_bounds = array<i64: 1, 4, 8, 8>}]} {
    %c0 = arith.constant 0 : index
    %c0_0 = arith.constant 0 : index
    %c0_1 = arith.constant 0 : index
    %0 = vector.load %arg2[%c0, %c0_0, %c0_1] : memref<1x8x32xf32, #tpu.memory_space<vmem>>, vector<1x8x32xf32>
    %1 = vector.shape_cast %0 : vector<1x8x32xf32> to vector<8x32xf32>
    %c0_2 = arith.constant 0 : index
    %c0_3 = arith.constant 0 : index
    %2 = vector.load %arg3[%c0_2, %c0_3] : memref<2x32xf32, #tpu.memory_space<vmem>>, vector<1x32xf32>
    %3 = vector.shape_cast %2 : vector<1x32xf32> to vector<32xf32>
    %c1 = arith.constant 1 : index
    %c0_4 = arith.constant 0 : index
    %4 = vector.load %arg3[%c1, %c0_4] : memref<2x32xf32, #tpu.memory_space<vmem>>, vector<1x32xf32>
    %5 = vector.shape_cast %4 : vector<1x32xf32> to vector<32xf32>
    %cst = arith.constant dense<0.000000e+00> : vector<8xf32>
    %6 = vector.multi_reduction <add>, %1, %cst [1] : vector<8x32xf32> to vector<8xf32>
    %7 = vector.shape_cast %6 : vector<8xf32> to vector<8x1xf32>
    %cst_5 = arith.constant 3.200000e+01 : f32
    %8 = vector.broadcast %cst_5 : f32 to vector<8x1xf32>
    %9 = arith.divf %7, %8 : vector<8x1xf32>
    %10 = vector.broadcast %9 : vector<8x1xf32> to vector<8x32xf32>
    %11 = arith.subf %1, %10 : vector<8x32xf32>
    %12 = arith.mulf %11, %11 : vector<8x32xf32>
    %cst_6 = arith.constant dense<0.000000e+00> : vector<8xf32>
    %13 = vector.multi_reduction <add>, %12, %cst_6 [1] : vector<8x32xf32> to vector<8xf32>
    %14 = vector.shape_cast %13 : vector<8xf32> to vector<8x1xf32>
    %cst_7 = arith.constant 3.200000e+01 : f32
    %15 = vector.broadcast %cst_7 : f32 to vector<8x1xf32>
    %16 = arith.divf %14, %15 : vector<8x1xf32>
    %17 = vector.broadcast %9 : vector<8x1xf32> to vector<8x32xf32>
    %18 = arith.subf %1, %17 : vector<8x32xf32>
    %cst_8 = arith.constant 9.99999974E-6 : f32
    %19 = vector.broadcast %cst_8 : f32 to vector<8x1xf32>
    %20 = arith.addf %16, %19 : vector<8x1xf32>
    %21 = math.rsqrt %20 : vector<8x1xf32>
    %22 = vector.broadcast %21 : vector<8x1xf32> to vector<8x32xf32>
    %23 = arith.mulf %18, %22 : vector<8x32xf32>
    %24 = vector.shape_cast %3 : vector<32xf32> to vector<1x32xf32>
    %25 = vector.broadcast %24 : vector<1x32xf32> to vector<8x32xf32>
    %26 = arith.mulf %23, %25 : vector<8x32xf32>
    %27 = vector.shape_cast %5 : vector<32xf32> to vector<1x32xf32>
    %28 = vector.broadcast %27 : vector<1x32xf32> to vector<8x32xf32>
    %29 = arith.addf %26, %28 : vector<8x32xf32>
    %30 = arith.truncf %29 : vector<8x32xf32> to vector<8x32xbf16>
    %c0_9 = arith.constant 0 : index
    %c0_10 = arith.constant 0 : index
    %31 = vector.load %arg4[%c0_9, %c0_10] : memref<32x96xbf16, #tpu.memory_space<vmem>>, vector<32x96xbf16>
    %cst_11 = arith.constant dense<0.000000e+00> : vector<8x96xf32>
    %32 = tpu.matmul %30, %31, %cst_11 {dimension_numbers = #tpu.dot_dimension_numbers<[1], [0], [0], [1], [0, 0, 1, 1], [], []>} : vector<8x32xbf16>, vector<32x96xbf16>, vector<8x96xf32> -> vector<8x96xf32>
    %c0_12 = arith.constant 0 : index
    %c0_13 = arith.constant 0 : index
    %33 = vector.load %arg5[%c0_12, %c0_13] : memref<1x96xf32, #tpu.memory_space<vmem>>, vector<1x96xf32>
    %34 = vector.shape_cast %33 : vector<1x96xf32> to vector<96xf32>
    %35 = vector.shape_cast %34 : vector<96xf32> to vector<1x96xf32>
    %36 = vector.broadcast %35 : vector<1x96xf32> to vector<8x96xf32>
    %37 = arith.addf %32, %36 : vector<8x96xf32>
    %38 = vector.extract_strided_slice %37 {offsets = [0, 0], sizes = [8, 32], strides = [1, 1]} : vector<8x96xf32> to vector<8x32xf32>
    %cst_14 = arith.constant 0.353553385 : f32
    %39 = vector.broadcast %cst_14 : f32 to vector<8x32xf32>
    %40 = arith.mulf %38, %39 : vector<8x32xf32>
    %41 = vector.extract_strided_slice %40 {offsets = [0, 0], sizes = [8, 8], strides = [1, 1]} : vector<8x32xf32> to vector<8x8xf32>
    %42 = arith.truncf %41 : vector<8x8xf32> to vector<8x8xbf16>
    %c0_15 = arith.constant 0 : index
    %c0_16 = arith.constant 0 : index
    %c0_17 = arith.constant 0 : index
    %c0_18 = arith.constant 0 : index
    %43 = vector.load %arg6[%c0_15, %c0_16, %c0_17, %c0_18] : memref<1x4x8x8xbf16, #tpu.memory_space<vmem>>, vector<1x1x8x8xbf16>
    %44 = vector.shape_cast %43 : vector<1x1x8x8xbf16> to vector<8x8xbf16>
    %45 = vector.shape_cast %42 : vector<8x8xbf16> to vector<1x1x8x8xbf16>
    tpu.vector_store %arg6[%c0_15, %c0_16, %c0_17, %c0_18], %45 {strides = array<i32>} : memref<1x4x8x8xbf16, #tpu.memory_space<vmem>>, vector<1x1x8x8xbf16>,
    %46 = vector.extract_strided_slice %37 {offsets = [0, 32], sizes = [8, 8], strides = [1, 1]} : vector<8x96xf32> to vector<8x8xf32>
    %47 = arith.truncf %46 : vector<8x8xf32> to vector<8x8xbf16>
    %c0_19 = arith.constant 0 : index
    %c0_20 = arith.constant 0 : index
    %c0_21 = arith.constant 0 : index
    %c0_22 = arith.constant 0 : index
    %48 = vector.load %arg7[%c0_19, %c0_20, %c0_21, %c0_22] : memref<1x4x8x8xbf16, #tpu.memory_space<vmem>>, vector<1x1x8x8xbf16>
    %49 = vector.shape_cast %48 : vector<1x1x8x8xbf16> to vector<8x8xbf16>
    %50 = vector.shape_cast %47 : vector<8x8xbf16> to vector<1x1x8x8xbf16>
    tpu.vector_store %arg7[%c0_19, %c0_20, %c0_21, %c0_22], %50 {strides = array<i32>} : memref<1x4x8x8xbf16, #tpu.memory_space<vmem>>, vector<1x1x8x8xbf16>,
    %51 = vector.extract_strided_slice %37 {offsets = [0, 64], sizes = [8, 8], strides = [1, 1]} : vector<8x96xf32> to vector<8x8xf32>
    %52 = arith.truncf %51 : vector<8x8xf32> to vector<8x8xbf16>
    %c0_23 = arith.constant 0 : index
    %c0_24 = arith.constant 0 : index
    %c0_25 = arith.constant 0 : index
    %c0_26 = arith.constant 0 : index
    %53 = vector.load %arg8[%c0_23, %c0_24, %c0_25, %c0_26] : memref<1x4x8x8xbf16, #tpu.memory_space<vmem>>, vector<1x1x8x8xbf16>
    %54 = vector.shape_cast %53 : vector<1x1x8x8xbf16> to vector<8x8xbf16>
    %55 = vector.shape_cast %52 : vector<8x8xbf16> to vector<1x1x8x8xbf16>
    tpu.vector_store %arg8[%c0_23, %c0_24, %c0_25, %c0_26], %55 {strides = array<i32>} : memref<1x4x8x8xbf16, #tpu.memory_space<vmem>>, vector<1x1x8x8xbf16>,
    %56 = vector.extract_strided_slice %40 {offsets = [0, 8], sizes = [8, 8], strides = [1, 1]} : vector<8x32xf32> to vector<8x8xf32>
    %57 = arith.truncf %56 : vector<8x8xf32> to vector<8x8xbf16>
    %c0_27 = arith.constant 0 : index
    %c1_28 = arith.constant 1 : index
    %c0_29 = arith.constant 0 : index
    %c0_30 = arith.constant 0 : index
    %58 = vector.load %arg6[%c0_27, %c1_28, %c0_29, %c0_30] : memref<1x4x8x8xbf16, #tpu.memory_space<vmem>>, vector<1x1x8x8xbf16>
    %59 = vector.shape_cast %58 : vector<1x1x8x8xbf16> to vector<8x8xbf16>
    %60 = vector.shape_cast %57 : vector<8x8xbf16> to vector<1x1x8x8xbf16>
    tpu.vector_store %arg6[%c0_27, %c1_28, %c0_29, %c0_30], %60 {strides = array<i32>} : memref<1x4x8x8xbf16, #tpu.memory_space<vmem>>, vector<1x1x8x8xbf16>,
    %61 = vector.extract_strided_slice %37 {offsets = [0, 40], sizes = [8, 8], strides = [1, 1]} : vector<8x96xf32> to vector<8x8xf32>
    %62 = arith.truncf %61 : vector<8x8xf32> to vector<8x8xbf16>
    %c0_31 = arith.constant 0 : index
    %c1_32 = arith.constant 1 : index
    %c0_33 = arith.constant 0 : index
    %c0_34 = arith.constant 0 : index
    %63 = vector.load %arg7[%c0_31, %c1_32, %c0_33, %c0_34] : memref<1x4x8x8xbf16, #tpu.memory_space<vmem>>, vector<1x1x8x8xbf16>
    %64 = vector.shape_cast %63 : vector<1x1x8x8xbf16> to vector<8x8xbf16>
    %65 = vector.shape_cast %62 : vector<8x8xbf16> to vector<1x1x8x8xbf16>
    tpu.vector_store %arg7[%c0_31, %c1_32, %c0_33, %c0_34], %65 {strides = array<i32>} : memref<1x4x8x8xbf16, #tpu.memory_space<vmem>>, vector<1x1x8x8xbf16>,
    %66 = vector.extract_strided_slice %37 {offsets = [0, 72], sizes = [8, 8], strides = [1, 1]} : vector<8x96xf32> to vector<8x8xf32>
    %67 = arith.truncf %66 : vector<8x8xf32> to vector<8x8xbf16>
    %c0_35 = arith.constant 0 : index
    %c1_36 = arith.constant 1 : index
    %c0_37 = arith.constant 0 : index
    %c0_38 = arith.constant 0 : index
    %68 = vector.load %arg8[%c0_35, %c1_36, %c0_37, %c0_38] : memref<1x4x8x8xbf16, #tpu.memory_space<vmem>>, vector<1x1x8x8xbf16>
    %69 = vector.shape_cast %68 : vector<1x1x8x8xbf16> to vector<8x8xbf16>
    %70 = vector.shape_cast %67 : vector<8x8xbf16> to vector<1x1x8x8xbf16>
    tpu.vector_store %arg8[%c0_35, %c1_36, %c0_37, %c0_38], %70 {strides = array<i32>} : memref<1x4x8x8xbf16, #tpu.memory_space<vmem>>, vector<1x1x8x8xbf16>,
    %71 = vector.extract_strided_slice %40 {offsets = [0, 16], sizes = [8, 8], strides = [1, 1]} : vector<8x32xf32> to vector<8x8xf32>
    %72 = arith.truncf %71 : vector<8x8xf32> to vector<8x8xbf16>
    %c0_39 = arith.constant 0 : index
    %c2 = arith.constant 2 : index
    %c0_40 = arith.constant 0 : index
    %c0_41 = arith.constant 0 : index
    %73 = vector.load %arg6[%c0_39, %c2, %c0_40, %c0_41] : memref<1x4x8x8xbf16, #tpu.memory_space<vmem>>, vector<1x1x8x8xbf16>
    %74 = vector.shape_cast %73 : vector<1x1x8x8xbf16> to vector<8x8xbf16>
    %75 = vector.shape_cast %72 : vector<8x8xbf16> to vector<1x1x8x8xbf16>
    tpu.vector_store %arg6[%c0_39, %c2, %c0_40, %c0_41], %75 {strides = array<i32>} : memref<1x4x8x8xbf16, #tpu.memory_space<vmem>>, vector<1x1x8x8xbf16>,
    %76 = vector.extract_strided_slice %37 {offsets = [0, 48], sizes = [8, 8], strides = [1, 1]} : vector<8x96xf32> to vector<8x8xf32>
    %77 = arith.truncf %76 : vector<8x8xf32> to vector<8x8xbf16>
    %c0_42 = arith.constant 0 : index
    %c2_43 = arith.constant 2 : index
    %c0_44 = arith.constant 0 : index
    %c0_45 = arith.constant 0 : index
    %78 = vector.load %arg7[%c0_42, %c2_43, %c0_44, %c0_45] : memref<1x4x8x8xbf16, #tpu.memory_space<vmem>>, vector<1x1x8x8xbf16>
    %79 = vector.shape_cast %78 : vector<1x1x8x8xbf16> to vector<8x8xbf16>
    %80 = vector.shape_cast %77 : vector<8x8xbf16> to vector<1x1x8x8xbf16>
    tpu.vector_store %arg7[%c0_42, %c2_43, %c0_44, %c0_45], %80 {strides = array<i32>} : memref<1x4x8x8xbf16, #tpu.memory_space<vmem>>, vector<1x1x8x8xbf16>,
    %81 = vector.extract_strided_slice %37 {offsets = [0, 80], sizes = [8, 8], strides = [1, 1]} : vector<8x96xf32> to vector<8x8xf32>
    %82 = arith.truncf %81 : vector<8x8xf32> to vector<8x8xbf16>
    %c0_46 = arith.constant 0 : index
    %c2_47 = arith.constant 2 : index
    %c0_48 = arith.constant 0 : index
    %c0_49 = arith.constant 0 : index
    %83 = vector.load %arg8[%c0_46, %c2_47, %c0_48, %c0_49] : memref<1x4x8x8xbf16, #tpu.memory_space<vmem>>, vector<1x1x8x8xbf16>
    %84 = vector.shape_cast %83 : vector<1x1x8x8xbf16> to vector<8x8xbf16>
    %85 = vector.shape_cast %82 : vector<8x8xbf16> to vector<1x1x8x8xbf16>
    tpu.vector_store %arg8[%c0_46, %c2_47, %c0_48, %c0_49], %85 {strides = array<i32>} : memref<1x4x8x8xbf16, #tpu.memory_space<vmem>>, vector<1x1x8x8xbf16>,
    %86 = vector.extract_strided_slice %40 {offsets = [0, 24], sizes = [8, 8], strides = [1, 1]} : vector<8x32xf32> to vector<8x8xf32>
    %87 = arith.truncf %86 : vector<8x8xf32> to vector<8x8xbf16>
    %c0_50 = arith.constant 0 : index
    %c3 = arith.constant 3 : index
    %c0_51 = arith.constant 0 : index
    %c0_52 = arith.constant 0 : index
    %88 = vector.load %arg6[%c0_50, %c3, %c0_51, %c0_52] : memref<1x4x8x8xbf16, #tpu.memory_space<vmem>>, vector<1x1x8x8xbf16>
    %89 = vector.shape_cast %88 : vector<1x1x8x8xbf16> to vector<8x8xbf16>
    %90 = vector.shape_cast %87 : vector<8x8xbf16> to vector<1x1x8x8xbf16>
    tpu.vector_store %arg6[%c0_50, %c3, %c0_51, %c0_52], %90 {strides = array<i32>} : memref<1x4x8x8xbf16, #tpu.memory_space<vmem>>, vector<1x1x8x8xbf16>,
    %91 = vector.extract_strided_slice %37 {offsets = [0, 56], sizes = [8, 8], strides = [1, 1]} : vector<8x96xf32> to vector<8x8xf32>
    %92 = arith.truncf %91 : vector<8x8xf32> to vector<8x8xbf16>
    %c0_53 = arith.constant 0 : index
    %c3_54 = arith.constant 3 : index
    %c0_55 = arith.constant 0 : index
    %c0_56 = arith.constant 0 : index
    %93 = vector.load %arg7[%c0_53, %c3_54, %c0_55, %c0_56] : memref<1x4x8x8xbf16, #tpu.memory_space<vmem>>, vector<1x1x8x8xbf16>
    %94 = vector.shape_cast %93 : vector<1x1x8x8xbf16> to vector<8x8xbf16>
    %95 = vector.shape_cast %92 : vector<8x8xbf16> to vector<1x1x8x8xbf16>
    tpu.vector_store %arg7[%c0_53, %c3_54, %c0_55, %c0_56], %95 {strides = array<i32>} : memref<1x4x8x8xbf16, #tpu.memory_space<vmem>>, vector<1x1x8x8xbf16>,
    %96 = vector.extract_strided_slice %37 {offsets = [0, 88], sizes = [8, 8], strides = [1, 1]} : vector<8x96xf32> to vector<8x8xf32>
    %97 = arith.truncf %96 : vector<8x8xf32> to vector<8x8xbf16>
    %c0_57 = arith.constant 0 : index
    %c3_58 = arith.constant 3 : index
    %c0_59 = arith.constant 0 : index
    %c0_60 = arith.constant 0 : index
    %98 = vector.load %arg8[%c0_57, %c3_58, %c0_59, %c0_60] : memref<1x4x8x8xbf16, #tpu.memory_space<vmem>>, vector<1x1x8x8xbf16>
    %99 = vector.shape_cast %98 : vector<1x1x8x8xbf16> to vector<8x8xbf16>
    %100 = vector.shape_cast %97 : vector<8x8xbf16> to vector<1x1x8x8xbf16>
    tpu.vector_store %arg8[%c0_57, %c3_58, %c0_59, %c0_60], %100 {strides = array<i32>} : memref<1x4x8x8xbf16, #tpu.memory_space<vmem>>, vector<1x1x8x8xbf16>,
    return
  }
  func.func @transform_0(%arg0: i32, %arg1: i32) -> (i32, i32, i32) {
    %c0_i32 = arith.constant 0 : i32
    %c0_i32_0 = arith.constant 0 : i32
    return %arg0, %arg1, %c0_i32 : i32, i32, i32
  }
  func.func @transform_1(%arg0: i32, %arg1: i32) -> (i32, i32) {
    %c0_i32 = arith.constant 0 : i32
    %c0_i32_0 = arith.constant 0 : i32
    %c0_i32_1 = arith.constant 0 : i32
    return %c0_i32, %c0_i32_0 : i32, i32
  }
  func.func @transform_2(%arg0: i32, %arg1: i32) -> (i32, i32) {
    %c0_i32 = arith.constant 0 : i32
    %c0_i32_0 = arith.constant 0 : i32
    %c0_i32_1 = arith.constant 0 : i32
    return %c0_i32, %c0_i32_0 : i32, i32
  }
  func.func @transform_3(%arg0: i32, %arg1: i32) -> (i32, i32) {
    %c0_i32 = arith.constant 0 : i32
    %c0_i32_0 = arith.constant 0 : i32
    %c0_i32_1 = arith.constant 0 : i32
    return %c0_i32, %c0_i32_0 : i32, i32
  }
  func.func @transform_4(%arg0: i32, %arg1: i32) -> (i32, i32, i32, i32) {
    %c0_i32 = arith.constant 0 : i32
    %c0_i32_0 = arith.constant 0 : i32
    %c0_i32_1 = arith.constant 0 : i32
    return %arg0, %c0_i32, %arg1, %c0_i32_0 : i32, i32, i32, i32
  }
  func.func @transform_5(%arg0: i32, %arg1: i32) -> (i32, i32, i32, i32) {
    %c0_i32 = arith.constant 0 : i32
    %c0_i32_0 = arith.constant 0 : i32
    %c0_i32_1 = arith.constant 0 : i32
    return %arg0, %c0_i32, %arg1, %c0_i32_0 : i32, i32, i32, i32
  }
  func.func @transform_6(%arg0: i32, %arg1: i32) -> (i32, i32, i32, i32) {
    %c0_i32 = arith.constant 0 : i32
    %c0_i32_0 = arith.constant 0 : i32
    %c0_i32_1 = arith.constant 0 : i32
    return %arg0, %c0_i32, %arg1, %c0_i32_0 : i32, i32, i32, i32
  }
}

module attributes {stable_mosaic.version = 11 : i64} {
  func.func @_qkv_kernel(%arg0: i32, %arg1: i32, %arg2: memref<1x8x32xf32, #tpu.memory_space<vmem>>, %arg3: memref<2x32xf32, #tpu.memory_space<vmem>>, %arg4: memref<32x96xbf16, #tpu.memory_space<vmem>>, %arg5: memref<1x96xf32, #tpu.memory_space<vmem>>, %arg6: memref<1x4x8x8xbf16, #tpu.memory_space<vmem>>, %arg7: memref<1x4x8x8xbf16, #tpu.memory_space<vmem>>, %arg8: memref<1x4x8x8xbf16, #tpu.memory_space<vmem>>) attributes {dimension_semantics = [#tpu.dimension_semantics<parallel>, #tpu.dimension_semantics<parallel>], iteration_bounds = array<i64: 2, 1>, scalar_prefetch = 0 : i64, scratch_operands = 0 : i64, tpu.core_type = #tpu.core_type<tc>, window_params = [{transform_indices = @transform_0, window_bounds = array<i64: 1, 8, 32>}, {pipeline_mode = #tpu.pipeline_mode<synchronous>, transform_indices = @transform_1, window_bounds = array<i64: 2, 32>}, {pipeline_mode = #tpu.pipeline_mode<synchronous>, transform_indices = @transform_2, window_bounds = array<i64: 32, 96>}, {pipeline_mode = #tpu.pipeline_mode<synchronous>, transform_indices = @transform_3, window_bounds = array<i64: 1, 96>}, {transform_indices = @transform_4, window_bounds = array<i64: 1, 4, 8, 8>}, {transform_indices = @transform_5, window_bounds = array<i64: 1, 4, 8, 8>}, {transform_indices = @transform_6, window_bounds = array<i64: 1, 4, 8, 8>}]} {
    %c0 = arith.constant 0 : index
    %c0_0 = arith.constant 0 : index
    %c0_1 = arith.constant 0 : index
    %0 = vector.load %arg2[%c0, %c0_0, %c0_1] : memref<1x8x32xf32, #tpu.memory_space<vmem>>, vector<1x8x32xf32>
    %1 = vector.shape_cast %0 : vector<1x8x32xf32> to vector<8x32xf32>
    %c0_2 = arith.constant 0 : index
    %c0_3 = arith.constant 0 : index
    %2 = vector.load %arg3[%c0_2, %c0_3] : memref<2x32xf32, #tpu.memory_space<vmem>>, vector<1x32xf32>
    %3 = vector.shape_cast %2 : vector<1x32xf32> to vector<32xf32>
    %c1 = arith.constant 1 : index
    %c0_4 = arith.constant 0 : index
    %4 = vector.load %arg3[%c1, %c0_4] : memref<2x32xf32, #tpu.memory_space<vmem>>, vector<1x32xf32>
    %5 = vector.shape_cast %4 : vector<1x32xf32> to vector<32xf32>
    %cst = arith.constant dense<0.000000e+00> : vector<8xf32>
    %6 = vector.multi_reduction <add>, %1, %cst [1] : vector<8x32xf32> to vector<8xf32>
    %7 = vector.shape_cast %6 : vector<8xf32> to vector<8x1xf32>
    %cst_5 = arith.constant 3.200000e+01 : f32
    %8 = vector.broadcast %cst_5 : f32 to vector<8x1xf32>
    %9 = arith.divf %7, %8 : vector<8x1xf32>
    %10 = vector.broadcast %9 : vector<8x1xf32> to vector<8x32xf32>
    %11 = arith.subf %1, %10 : vector<8x32xf32>
    %12 = arith.mulf %11, %11 : vector<8x32xf32>
    %cst_6 = arith.constant dense<0.000000e+00> : vector<8xf32>
    %13 = vector.multi_reduction <add>, %12, %cst_6 [1] : vector<8x32xf32> to vector<8xf32>
    %14 = vector.shape_cast %13 : vector<8xf32> to vector<8x1xf32>
    %cst_7 = arith.constant 3.200000e+01 : f32
    %15 = vector.broadcast %cst_7 : f32 to vector<8x1xf32>
    %16 = arith.divf %14, %15 : vector<8x1xf32>
    %17 = vector.broadcast %9 : vector<8x1xf32> to vector<8x32xf32>
    %18 = arith.subf %1, %17 : vector<8x32xf32>
    %cst_8 = arith.constant 9.99999974E-6 : f32
    %19 = vector.broadcast %cst_8 : f32 to vector<8x1xf32>
    %20 = arith.addf %16, %19 : vector<8x1xf32>
    %21 = math.rsqrt %20 : vector<8x1xf32>
    %22 = vector.broadcast %21 : vector<8x1xf32> to vector<8x32xf32>
    %23 = arith.mulf %18, %22 : vector<8x32xf32>
    %24 = vector.shape_cast %3 : vector<32xf32> to vector<1x32xf32>
    %25 = vector.broadcast %24 : vector<1x32xf32> to vector<8x32xf32>
    %26 = arith.mulf %23, %25 : vector<8x32xf32>
    %27 = vector.shape_cast %5 : vector<32xf32> to vector<1x32xf32>
    %28 = vector.broadcast %27 : vector<1x32xf32> to vector<8x32xf32>
    %29 = arith.addf %26, %28 : vector<8x32xf32>
    %30 = arith.truncf %29 : vector<8x32xf32> to vector<8x32xbf16>
    %c0_9 = arith.constant 0 : index
    %c0_10 = arith.constant 0 : index
    %31 = vector.load %arg4[%c0_9, %c0_10] : memref<32x96xbf16, #tpu.memory_space<vmem>>, vector<32x96xbf16>
    %cst_11 = arith.constant dense<0.000000e+00> : vector<8x96xf32>
    %32 = tpu.matmul %30, %31, %cst_11 {dimension_numbers = #tpu.dot_dimension_numbers<[1], [0], [0], [1], [0, 0, 1, 1], [], []>} : vector<8x32xbf16>, vector<32x96xbf16>, vector<8x96xf32> -> vector<8x96xf32>
    %c0_12 = arith.constant 0 : index
    %c0_13 = arith.constant 0 : index
    %33 = vector.load %arg5[%c0_12, %c0_13] : memref<1x96xf32, #tpu.memory_space<vmem>>, vector<1x96xf32>
    %34 = vector.shape_cast %33 : vector<1x96xf32> to vector<96xf32>
    %35 = vector.shape_cast %34 : vector<96xf32> to vector<1x96xf32>
    %36 = vector.broadcast %35 : vector<1x96xf32> to vector<8x96xf32>
    %37 = arith.addf %32, %36 : vector<8x96xf32>
    %38 = vector.extract_strided_slice %37 {offsets = [0, 0], sizes = [8, 32], strides = [1, 1]} : vector<8x96xf32> to vector<8x32xf32>
    %cst_14 = arith.constant 0.353553385 : f32
    %39 = vector.broadcast %cst_14 : f32 to vector<8x32xf32>
    %40 = arith.mulf %38, %39 : vector<8x32xf32>
    %41 = vector.extract_strided_slice %40 {offsets = [0, 0], sizes = [8, 8], strides = [1, 1]} : vector<8x32xf32> to vector<8x8xf32>
    %42 = arith.truncf %41 : vector<8x8xf32> to vector<8x8xbf16>
    %c0_15 = arith.constant 0 : index
    %c0_16 = arith.constant 0 : index
    %c0_17 = arith.constant 0 : index
    %c0_18 = arith.constant 0 : index
    %43 = vector.load %arg6[%c0_15, %c0_16, %c0_17, %c0_18] : memref<1x4x8x8xbf16, #tpu.memory_space<vmem>>, vector<1x1x8x8xbf16>
    %44 = vector.shape_cast %43 : vector<1x1x8x8xbf16> to vector<8x8xbf16>
    %45 = vector.shape_cast %42 : vector<8x8xbf16> to vector<1x1x8x8xbf16>
    tpu.vector_store %arg6[%c0_15, %c0_16, %c0_17, %c0_18], %45 {strides = array<i32>} : memref<1x4x8x8xbf16, #tpu.memory_space<vmem>>, vector<1x1x8x8xbf16>,
    %46 = vector.extract_strided_slice %37 {offsets = [0, 32], sizes = [8, 8], strides = [1, 1]} : vector<8x96xf32> to vector<8x8xf32>
    %47 = arith.truncf %46 : vector<8x8xf32> to vector<8x8xbf16>
    %c0_19 = arith.constant 0 : index
    %c0_20 = arith.constant 0 : index
    %c0_21 = arith.constant 0 : index
    %c0_22 = arith.constant 0 : index
    %48 = vector.load %arg7[%c0_19, %c0_20, %c0_21, %c0_22] : memref<1x4x8x8xbf16, #tpu.memory_space<vmem>>, vector<1x1x8x8xbf16>
    %49 = vector.shape_cast %48 : vector<1x1x8x8xbf16> to vector<8x8xbf16>
    %50 = vector.shape_cast %47 : vector<8x8xbf16> to vector<1x1x8x8xbf16>
    tpu.vector_store %arg7[%c0_19, %c0_20, %c0_21, %c0_22], %50 {strides = array<i32>} : memref<1x4x8x8xbf16, #tpu.memory_space<vmem>>, vector<1x1x8x8xbf16>,
    %51 = vector.extract_strided_slice %37 {offsets = [0, 64], sizes = [8, 8], strides = [1, 1]} : vector<8x96xf32> to vector<8x8xf32>
    %52 = arith.truncf %51 : vector<8x8xf32> to vector<8x8xbf16>
    %c0_23 = arith.constant 0 : index
    %c0_24 = arith.constant 0 : index
    %c0_25 = arith.constant 0 : index
    %c0_26 = arith.constant 0 : index
    %53 = vector.load %arg8[%c0_23, %c0_24, %c0_25, %c0_26] : memref<1x4x8x8xbf16, #tpu.memory_space<vmem>>, vector<1x1x8x8xbf16>
    %54 = vector.shape_cast %53 : vector<1x1x8x8xbf16> to vector<8x8xbf16>
    %55 = vector.shape_cast %52 : vector<8x8xbf16> to vector<1x1x8x8xbf16>
    tpu.vector_store %arg8[%c0_23, %c0_24, %c0_25, %c0_26], %55 {strides = array<i32>} : memref<1x4x8x8xbf16, #tpu.memory_space<vmem>>, vector<1x1x8x8xbf16>,
    %56 = vector.extract_strided_slice %40 {offsets = [0, 8], sizes = [8, 8], strides = [1, 1]} : vector<8x32xf32> to vector<8x8xf32>
    %57 = arith.truncf %56 : vector<8x8xf32> to vector<8x8xbf16>
    %c0_27 = arith.constant 0 : index
    %c1_28 = arith.constant 1 : index
    %c0_29 = arith.constant 0 : index
    %c0_30 = arith.constant 0 : index
    %58 = vector.load %arg6[%c0_27, %c1_28, %c0_29, %c0_30] : memref<1x4x8x8xbf16, #tpu.memory_space<vmem>>, vector<1x1x8x8xbf16>
    %59 = vector.shape_cast %58 : vector<1x1x8x8xbf16> to vector<8x8xbf16>
    %60 = vector.shape_cast %57 : vector<8x8xbf16> to vector<1x1x8x8xbf16>
    tpu.vector_store %arg6[%c0_27, %c1_28, %c0_29, %c0_30], %60 {strides = array<i32>} : memref<1x4x8x8xbf16, #tpu.memory_space<vmem>>, vector<1x1x8x8xbf16>,
    %61 = vector.extract_strided_slice %37 {offsets = [0, 40], sizes = [8, 8], strides = [1, 1]} : vector<8x96xf32> to vector<8x8xf32>
    %62 = arith.truncf %61 : vector<8x8xf32> to vector<8x8xbf16>
    %c0_31 = arith.constant 0 : index
    %c1_32 = arith.constant 1 : index
    %c0_33 = arith.constant 0 : index
    %c0_34 = arith.constant 0 : index
    %63 = vector.load %arg7[%c0_31, %c1_32, %c0_33, %c0_34] : memref<1x4x8x8xbf16, #tpu.memory_space<vmem>>, vector<1x1x8x8xbf16>
    %64 = vector.shape_cast %63 : vector<1x1x8x8xbf16> to vector<8x8xbf16>
    %65 = vector.shape_cast %62 : vector<8x8xbf16> to vector<1x1x8x8xbf16>
    tpu.vector_store %arg7[%c0_31, %c1_32, %c0_33, %c0_34], %65 {strides = array<i32>} : memref<1x4x8x8xbf16, #tpu.memory_space<vmem>>, vector<1x1x8x8xbf16>,
    %66 = vector.extract_strided_slice %37 {offsets = [0, 72], sizes = [8, 8], strides = [1, 1]} : vector<8x96xf32> to vector<8x8xf32>
    %67 = arith.truncf %66 : vector<8x8xf32> to vector<8x8xbf16>
    %c0_35 = arith.constant 0 : index
    %c1_36 = arith.constant 1 : index
    %c0_37 = arith.constant 0 : index
    %c0_38 = arith.constant 0 : index
    %68 = vector.load %arg8[%c0_35, %c1_36, %c0_37, %c0_38] : memref<1x4x8x8xbf16, #tpu.memory_space<vmem>>, vector<1x1x8x8xbf16>
    %69 = vector.shape_cast %68 : vector<1x1x8x8xbf16> to vector<8x8xbf16>
    %70 = vector.shape_cast %67 : vector<8x8xbf16> to vector<1x1x8x8xbf16>
    tpu.vector_store %arg8[%c0_35, %c1_36, %c0_37, %c0_38], %70 {strides = array<i32>} : memref<1x4x8x8xbf16, #tpu.memory_space<vmem>>, vector<1x1x8x8xbf16>,
    %71 = vector.extract_strided_slice %40 {offsets = [0, 16], sizes = [8, 8], strides = [1, 1]} : vector<8x32xf32> to vector<8x8xf32>
    %72 = arith.truncf %71 : vector<8x8xf32> to vector<8x8xbf16>
    %c0_39 = arith.constant 0 : index
    %c2 = arith.constant 2 : index
    %c0_40 = arith.constant 0 : index
    %c0_41 = arith.constant 0 : index
    %73 = vector.load %arg6[%c0_39, %c2, %c0_40, %c0_41] : memref<1x4x8x8xbf16, #tpu.memory_space<vmem>>, vector<1x1x8x8xbf16>
    %74 = vector.shape_cast %73 : vector<1x1x8x8xbf16> to vector<8x8xbf16>
    %75 = vector.shape_cast %72 : vector<8x8xbf16> to vector<1x1x8x8xbf16>
    tpu.vector_store %arg6[%c0_39, %c2, %c0_40, %c0_41], %75 {strides = array<i32>} : memref<1x4x8x8xbf16, #tpu.memory_space<vmem>>, vector<1x1x8x8xbf16>,
    %76 = vector.extract_strided_slice %37 {offsets = [0, 48], sizes = [8, 8], strides = [1, 1]} : vector<8x96xf32> to vector<8x8xf32>
    %77 = arith.truncf %76 : vector<8x8xf32> to vector<8x8xbf16>
    %c0_42 = arith.constant 0 : index
    %c2_43 = arith.constant 2 : index
    %c0_44 = arith.constant 0 : index
    %c0_45 = arith.constant 0 : index
    %78 = vector.load %arg7[%c0_42, %c2_43, %c0_44, %c0_45] : memref<1x4x8x8xbf16, #tpu.memory_space<vmem>>, vector<1x1x8x8xbf16>
    %79 = vector.shape_cast %78 : vector<1x1x8x8xbf16> to vector<8x8xbf16>
    %80 = vector.shape_cast %77 : vector<8x8xbf16> to vector<1x1x8x8xbf16>
    tpu.vector_store %arg7[%c0_42, %c2_43, %c0_44, %c0_45], %80 {strides = array<i32>} : memref<1x4x8x8xbf16, #tpu.memory_space<vmem>>, vector<1x1x8x8xbf16>,
    %81 = vector.extract_strided_slice %37 {offsets = [0, 80], sizes = [8, 8], strides = [1, 1]} : vector<8x96xf32> to vector<8x8xf32>
    %82 = arith.truncf %81 : vector<8x8xf32> to vector<8x8xbf16>
    %c0_46 = arith.constant 0 : index
    %c2_47 = arith.constant 2 : index
    %c0_48 = arith.constant 0 : index
    %c0_49 = arith.constant 0 : index
    %83 = vector.load %arg8[%c0_46, %c2_47, %c0_48, %c0_49] : memref<1x4x8x8xbf16, #tpu.memory_space<vmem>>, vector<1x1x8x8xbf16>
    %84 = vector.shape_cast %83 : vector<1x1x8x8xbf16> to vector<8x8xbf16>
    %85 = vector.shape_cast %82 : vector<8x8xbf16> to vector<1x1x8x8xbf16>
    tpu.vector_store %arg8[%c0_46, %c2_47, %c0_48, %c0_49], %85 {strides = array<i32>} : memref<1x4x8x8xbf16, #tpu.memory_space<vmem>>, vector<1x1x8x8xbf16>,
    %86 = vector.extract_strided_slice %40 {offsets = [0, 24], sizes = [8, 8], strides = [1, 1]} : vector<8x32xf32> to vector<8x8xf32>
    %87 = arith.truncf %86 : vector<8x8xf32> to vector<8x8xbf16>
    %c0_50 = arith.constant 0 : index
    %c3 = arith.constant 3 : index
    %c0_51 = arith.constant 0 : index
    %c0_52 = arith.constant 0 : index
    %88 = vector.load %arg6[%c0_50, %c3, %c0_51, %c0_52] : memref<1x4x8x8xbf16, #tpu.memory_space<vmem>>, vector<1x1x8x8xbf16>
    %89 = vector.shape_cast %88 : vector<1x1x8x8xbf16> to vector<8x8xbf16>
    %90 = vector.shape_cast %87 : vector<8x8xbf16> to vector<1x1x8x8xbf16>
    tpu.vector_store %arg6[%c0_50, %c3, %c0_51, %c0_52], %90 {strides = array<i32>} : memref<1x4x8x8xbf16, #tpu.memory_space<vmem>>, vector<1x1x8x8xbf16>,
    %91 = vector.extract_strided_slice %37 {offsets = [0, 56], sizes = [8, 8], strides = [1, 1]} : vector<8x96xf32> to vector<8x8xf32>
    %92 = arith.truncf %91 : vector<8x8xf32> to vector<8x8xbf16>
    %c0_53 = arith.constant 0 : index
    %c3_54 = arith.constant 3 : index
    %c0_55 = arith.constant 0 : index
    %c0_56 = arith.constant 0 : index
    %93 = vector.load %arg7[%c0_53, %c3_54, %c0_55, %c0_56] : memref<1x4x8x8xbf16, #tpu.memory_space<vmem>>, vector<1x1x8x8xbf16>
    %94 = vector.shape_cast %93 : vector<1x1x8x8xbf16> to vector<8x8xbf16>
    %95 = vector.shape_cast %92 : vector<8x8xbf16> to vector<1x1x8x8xbf16>
    tpu.vector_store %arg7[%c0_53, %c3_54, %c0_55, %c0_56], %95 {strides = array<i32>} : memref<1x4x8x8xbf16, #tpu.memory_space<vmem>>, vector<1x1x8x8xbf16>,
    %96 = vector.extract_strided_slice %37 {offsets = [0, 88], sizes = [8, 8], strides = [1, 1]} : vector<8x96xf32> to vector<8x8xf32>
    %97 = arith.truncf %96 : vector<8x8xf32> to vector<8x8xbf16>
    %c0_57 = arith.constant 0 : index
    %c3_58 = arith.constant 3 : index
    %c0_59 = arith.constant 0 : index
    %c0_60 = arith.constant 0 : index
    %98 = vector.load %arg8[%c0_57, %c3_58, %c0_59, %c0_60] : memref<1x4x8x8xbf16, #tpu.memory_space<vmem>>, vector<1x1x8x8xbf16>
    %99 = vector.shape_cast %98 : vector<1x1x8x8xbf16> to vector<8x8xbf16>
    %100 = vector.shape_cast %97 : vector<8x8xbf16> to vector<1x1x8x8xbf16>
    tpu.vector_store %arg8[%c0_57, %c3_58, %c0_59, %c0_60], %100 {strides = array<i32>} : memref<1x4x8x8xbf16, #tpu.memory_space<vmem>>, vector<1x1x8x8xbf16>,
    return
  }
  func.func @transform_0(%arg0: i32, %arg1: i32) -> (i32, i32, i32) {
    %c0_i32 = arith.constant 0 : i32
    %c0_i32_0 = arith.constant 0 : i32
    return %arg0, %arg1, %c0_i32 : i32, i32, i32
  }
  func.func @transform_1(%arg0: i32, %arg1: i32) -> (i32, i32) {
    %c0_i32 = arith.constant 0 : i32
    %c0_i32_0 = arith.constant 0 : i32
    %c0_i32_1 = arith.constant 0 : i32
    return %c0_i32, %c0_i32_0 : i32, i32
  }
  func.func @transform_2(%arg0: i32, %arg1: i32) -> (i32, i32) {
    %c0_i32 = arith.constant 0 : i32
    %c0_i32_0 = arith.constant 0 : i32
    %c0_i32_1 = arith.constant 0 : i32
    return %c0_i32, %c0_i32_0 : i32, i32
  }
  func.func @transform_3(%arg0: i32, %arg1: i32) -> (i32, i32) {
    %c0_i32 = arith.constant 0 : i32
    %c0_i32_0 = arith.constant 0 : i32
    %c0_i32_1 = arith.constant 0 : i32
    return %c0_i32, %c0_i32_0 : i32, i32
  }
  func.func @transform_4(%arg0: i32, %arg1: i32) -> (i32, i32, i32, i32) {
    %c0_i32 = arith.constant 0 : i32
    %c0_i32_0 = arith.constant 0 : i32
    %c0_i32_1 = arith.constant 0 : i32
    return %arg0, %c0_i32, %arg1, %c0_i32_0 : i32, i32, i32, i32
  }
  func.func @transform_5(%arg0: i32, %arg1: i32) -> (i32, i32, i32, i32) {
    %c0_i32 = arith.constant 0 : i32
    %c0_i32_0 = arith.constant 0 : i32
    %c0_i32_1 = arith.constant 0 : i32
    return %arg0, %c0_i32, %arg1, %c0_i32_0 : i32, i32, i32, i32
  }
  func.func @transform_6(%arg0: i32, %arg1: i32) -> (i32, i32, i32, i32) {
    %c0_i32 = arith.constant 0 : i32
    %c0_i32_0 = arith.constant 0 : i32
    %c0_i32_1 = arith.constant 0 : i32
    return %arg0, %c0_i32, %arg1, %c0_i32_0 : i32, i32, i32, i32
  }
}

</mosaic_0001>

<llo_original>
// kernel: tpu_custom_call.1
$region0: #{tpu_custom_call.1}
  #allocation0 [shape = 'u32[]', space=smem, size = 0x4, offset = 0x4, fixed_abs, tag = 'smem constant byte address 0x4 - core index']
  #allocation1 [shape = 'u32[144,128]{1,0:T(1,128)}', space=vmem, size = 0x12000, scoped, tag = 'internal scratch']
  %s0 = inlined_call_operand.hbm [shape: f32[2,8,32], index: 0, kind: input, shape index: {}]
  %s1 = inlined_call_operand.hbm [shape: f32[2,32], index: 1, kind: input, shape index: {}]
  %s2 = inlined_call_operand.hbm [shape: bf16[32,96], index: 2, kind: input, shape index: {}]
  %s3 = inlined_call_operand.vmem [shape: f32[1,96], index: 3, kind: input, shape index: {}]
  %s4 = inlined_call_operand.hbm [shape: bf16[2,4,8,8], index: 4, kind: output, shape index: {0}]
  %s5 = inlined_call_operand.hbm [shape: bf16[2,4,8,8], index: 5, kind: output, shape index: {1}]
  %s6 = inlined_call_operand.hbm [shape: bf16[2,4,8,8], index: 6, kind: output, shape index: {2}]
  %7 = xla_tuple %s4, %s5, %s6
  %s8 = sld [smem:[#allocation0]]
  $region77: #{tpu_custom_call.1} parent=0
    _
  %s10 = ssub.s32 1, %s8
  %s11 = scalar_select 0, %s10, %s8
  $region1: #{tpu_custom_call.1} parent=0
    #allocation2 [shape = 'u8[8192]{0}', space=vmem, size = 0x2000, scoped, tag = 'input window, operand 0']
    #allocation3 [shape = 's32[2]{0}', space=sflag, size = 0x8, scoped, tag = 'scoped memory for tpu_custom_call.1']
    #allocation4 [shape = 's32[2]{0}', space=sflag, size = 0x8, scoped, tag = 'scoped memory for tpu_custom_call.1']
    #allocation5 [shape = 'u8[1024]{0}', space=vmem, size = 0x400, scoped, tag = 'input window, operand 1, single buffered']
    #allocation6 [shape = 's32[1]{0}', space=sflag, size = 0x4, scoped, tag = 'scoped memory for tpu_custom_call.1']
    #allocation7 [shape = 'u8[8192]{0}', space=vmem, size = 0x2000, scoped, tag = 'input window, operand 2, single buffered']
    #allocation8 [shape = 'u8[16384]{0}', space=vmem, size = 0x4000, scoped, tag = 'output window, operand 0']
    #allocation9 [shape = 'u8[16384]{0}', space=vmem, size = 0x4000, scoped, tag = 'output window, operand 1']
    #allocation10 [shape = 's32[2]{0}', space=sflag, size = 0x8, scoped, tag = 'scoped memory for tpu_custom_call.1']
    #allocation11 [shape = 'u8[16384]{0}', space=vmem, size = 0x4000, scoped, tag = 'output window, operand 2']
    %12 = vsyncpa [#allocation3], 0
    %s13 = scalar_lea.sflag [#allocation3], 1
    %14 = vsyncpa %s13, 0
    %15 = vsyncpa [#allocation6], 0
    %16 = vsyncpa [#allocation4], 0
    %s17 = scalar_lea.sflag [#allocation4], 1
    %18 = vsyncpa %s17, 0
    %19 = vsyncpa [#allocation10], 0
    %s20 = scalar_lea.sflag [#allocation10], 1
    %21 = vsyncpa %s20, 0
    loop: start=0, step=1, limit=4
    $region2: #{tpu_custom_call.1} parent=1 // loop_pre_header
      _
    $region3: #{tpu_custom_call.1} parent=1 // loop_header
      %s23 = sphi 0, %s27
      %p24 = scmp.ge.s32.totalorder %s23, 4
      %s30 = sphi 0, %s42
      %s31 = sphi 0, %s38
      %s32 = sphi 0, %s30
      %s33 = sphi 0, %s31
      %s34 = sphi 0, %s32
      %s35 = sphi 0, %s33
      %s47 = sphi 0, %s49
      %s50 = sphi 0, %s47
      %s51 = sphi 0, %s50
      %s67 = sphi 0, %s51
      %s71 = sphi 0, %s71
      %s73 = sphi 0, %s71
      %s74 = sphi 0, %s73
      %s88 = sphi 0, %s74
      %s92 = sphi 0, %s92
      %s94 = sphi 0, %s92
      %s95 = sphi 0, %s94
      %s109 = sphi 0, %s95
      %s113 = sphi 0, %s113
      %s115 = sphi 0, %s113
      %s116 = sphi 0, %s115
      %s130 = sphi 0, %s116
      %s138 = sphi 0, %s140
      %s141 = sphi 0, %s138
      %s142 = sphi 0, %s141
      %s158 = sphi 0, %s142
      %s166 = sphi 0, %s168
      %s169 = sphi 0, %s166
      %s170 = sphi 0, %s169
      %s186 = sphi 0, %s170
      %s194 = sphi 0, %s196
      %s197 = sphi 0, %s194
      %s198 = sphi 0, %s197
      %s214 = sphi 0, %s198
    $region4: #{tpu_custom_call.1} parent=1 // loop_header_branch
      %26 = sbr.rel (%p24) target = $region8
    $region5: #{tpu_custom_call.1} parent=1 // loop_body
      %s28 = ssub.s32 %s23, 1
      %s29 = ssub.s32 %s23, 2
      %s36 = sadd.s32 1, %s31
      %p37 = scmp.ge.s32.totalorder %s36, 1
      %s38 = scalar_select %p37, 0, %s36
      %s39 = sadd.s32 1, %s30
      %s40 = scalar_select %p37, %s39, %s30
      %p41 = scmp.ge.s32.totalorder %s40, 2
      %s42 = scalar_select %p41, 0, %s40
      %s43 = ssub.s32 %s30, %s42
      %s44 = ssub.s32 %s31, %s38
      %s45 = sor.u32 %s43, %s44
      %p46 = scmp.eq.s32.totalorder %s45, 0
      %s48 = sadd.s32 %s47, 1
      %s49 = scalar_select %p46, %s47, %s48
      %p52 = pneg %p46
      %p53 = scmp.eq.s32.totalorder %s23, 1
      %p54 = por %p52, %p53
      %p55 = scmp.ne.s32.totalorder %s47, %s50
      %p56 = scmp.eq.s32.totalorder %s23, 0
      %p57 = por %p55, %p56
      %p58 = scmp.ne.s32.totalorder %s47, %s50
      %p59 = scmp.eq.s32.totalorder %s28, 1
      %p60 = por %p58, %p59
      %p61 = scmp.ne.s32.totalorder %s50, %s51
      %p62 = scmp.eq.s32.totalorder %s28, 0
      %p63 = por %p61, %p62
      %p64 = scmp.ne.s32.totalorder %s50, %s51
      %p65 = scmp.eq.s32.totalorder %s29, 1
      %p66 = por %p64, %p65
      %p68 = scmp.ne.s32.totalorder %s51, %s67
      %p69 = scmp.eq.s32.totalorder %s29, 0
      %p70 = por %p68, %p69
      %s72 = sadd.s32 %s71, 1
      %p75 = scmp.eq.s32.totalorder %s23, 1
      %p76 = scmp.ne.s32.totalorder %s71, %s73
      %p77 = scmp.eq.s32.totalorder %s23, 0
      %p78 = por %p76, %p77
      %p79 = scmp.ne.s32.totalorder %s71, %s73
      %p80 = scmp.eq.s32.totalorder %s28, 1
      %p81 = por %p79, %p80
      %p82 = scmp.ne.s32.totalorder %s73, %s74
      %p83 = scmp.eq.s32.totalorder %s28, 0
      %p84 = por %p82, %p83
      %p85 = scmp.ne.s32.totalorder %s73, %s74
      %p86 = scmp.eq.s32.totalorder %s29, 1
      %p87 = por %p85, %p86
      %p89 = scmp.ne.s32.totalorder %s74, %s88
      %p90 = scmp.eq.s32.totalorder %s29, 0
      %p91 = por %p89, %p90
      %s93 = sadd.s32 %s92, 1
      %p96 = scmp.eq.s32.totalorder %s23, 1
      %p97 = scmp.ne.s32.totalorder %s92, %s94
      %p98 = scmp.eq.s32.totalorder %s23, 0
      %p99 = por %p97, %p98
      %p100 = scmp.ne.s32.totalorder %s92, %s94
      %p101 = scmp.eq.s32.totalorder %s28, 1
      %p102 = por %p100, %p101
      %p103 = scmp.ne.s32.totalorder %s94, %s95
      %p104 = scmp.eq.s32.totalorder %s28, 0
      %p105 = por %p103, %p104
      %p106 = scmp.ne.s32.totalorder %s94, %s95
      %p107 = scmp.eq.s32.totalorder %s29, 1
      %p108 = por %p106, %p107
      %p110 = scmp.ne.s32.totalorder %s95, %s109
      %p111 = scmp.eq.s32.totalorder %s29, 0
      %p112 = por %p110, %p111
      %s114 = sadd.s32 %s113, 1
      %p117 = scmp.eq.s32.totalorder %s23, 1
      %p118 = scmp.ne.s32.totalorder %s113, %s115
      %p119 = scmp.eq.s32.totalorder %s23, 0
      %p120 = por %p118, %p119
      %p121 = scmp.ne.s32.totalorder %s113, %s115
      %p122 = scmp.eq.s32.totalorder %s28, 1
      %p123 = por %p121, %p122
      %p124 = scmp.ne.s32.totalorder %s115, %s116
      %p125 = scmp.eq.s32.totalorder %s28, 0
      %p126 = por %p124, %p125
      %p127 = scmp.ne.s32.totalorder %s115, %s116
      %p128 = scmp.eq.s32.totalorder %s29, 1
      %p129 = por %p127, %p128
      %p131 = scmp.ne.s32.totalorder %s116, %s130
      %p132 = scmp.eq.s32.totalorder %s29, 0
      %p133 = por %p131, %p132
      %s134 = ssub.s32 %s30, %s42
      %s135 = ssub.s32 %s31, %s38
      %s136 = sor.u32 %s134, %s135
      %p137 = scmp.eq.s32.totalorder %s136, 0
      %s139 = sadd.s32 %s138, 1
      %s140 = scalar_select %p137, %s138, %s139
      %p143 = pneg %p137
      %p144 = scmp.eq.s32.totalorder %s23, 1
      %p145 = por %p143, %p144
      %p146 = scmp.ne.s32.totalorder %s138, %s141
      %p147 = scmp.eq.s32.totalorder %s23, 0
      %p148 = por %p146, %p147
      %p149 = scmp.ne.s32.totalorder %s138, %s141
      %p150 = scmp.eq.s32.totalorder %s28, 1
      %p151 = por %p149, %p150
      %p152 = scmp.ne.s32.totalorder %s141, %s142
      %p153 = scmp.eq.s32.totalorder %s28, 0
      %p154 = por %p152, %p153
      %p155 = scmp.ne.s32.totalorder %s141, %s142
      %p156 = scmp.eq.s32.totalorder %s29, 1
      %p157 = por %p155, %p156
      %p159 = scmp.ne.s32.totalorder %s142, %s158
      %p160 = scmp.eq.s32.totalorder %s29, 0
      %p161 = por %p159, %p160
      %s162 = ssub.s32 %s30, %s42
      %s163 = ssub.s32 %s31, %s38
      %s164 = sor.u32 %s162, %s163
      %p165 = scmp.eq.s32.totalorder %s164, 0
      %s167 = sadd.s32 %s166, 1
      %s168 = scalar_select %p165, %s166, %s167
      %p171 = pneg %p165
      %p172 = scmp.eq.s32.totalorder %s23, 1
      %p173 = por %p171, %p172
      %p174 = scmp.ne.s32.totalorder %s166, %s169
      %p175 = scmp.eq.s32.totalorder %s23, 0
      %p176 = por %p174, %p175
      %p177 = scmp.ne.s32.totalorder %s166, %s169
      %p178 = scmp.eq.s32.totalorder %s28, 1
      %p179 = por %p177, %p178
      %p180 = scmp.ne.s32.totalorder %s169, %s170
      %p181 = scmp.eq.s32.totalorder %s28, 0
      %p182 = por %p180, %p181
      %p183 = scmp.ne.s32.totalorder %s169, %s170
      %p184 = scmp.eq.s32.totalorder %s29, 1
      %p185 = por %p183, %p184
      %p187 = scmp.ne.s32.totalorder %s170, %s186
      %p188 = scmp.eq.s32.totalorder %s29, 0
      %p189 = por %p187, %p188
      %s190 = ssub.s32 %s30, %s42
      %s191 = ssub.s32 %s31, %s38
      %s192 = sor.u32 %s190, %s191
      %p193 = scmp.eq.s32.totalorder %s192, 0
      %s195 = sadd.s32 %s194, 1
      %s196 = scalar_select %p193, %s194, %s195
      %p199 = pneg %p193
      %p200 = scmp.eq.s32.totalorder %s23, 1
      %p201 = por %p199, %p200
      %p202 = scmp.ne.s32.totalorder %s194, %s197
      %p203 = scmp.eq.s32.totalorder %s23, 0
      %p204 = por %p202, %p203
      %p205 = scmp.ne.s32.totalorder %s194, %s197
      %p206 = scmp.eq.s32.totalorder %s28, 1
      %p207 = por %p205, %p206
      %p208 = scmp.ne.s32.totalorder %s197, %s198
      %p209 = scmp.eq.s32.totalorder %s28, 0
      %p210 = por %p208, %p209
      %p211 = scmp.ne.s32.totalorder %s197, %s198
      %p212 = scmp.eq.s32.totalorder %s29, 1
      %p213 = por %p211, %p212
      %p215 = scmp.ne.s32.totalorder %s198, %s214
      %p216 = scmp.eq.s32.totalorder %s29, 0
      %p217 = por %p215, %p216
      %p218 = scmp.le.s32.totalorder 1, %s23
      %p219 = scmp.lt.s32.totalorder %s23, 3
      %p220 = pnand %p218, %p219
      %p221 = pneg %p220
      // Predicated region
      $region9: #{tpu_custom_call.1} parent=5 // pred_check
        _
      $region10: #{tpu_custom_call.1} parent=5 // pred_check_branch
        %223 = sbr.rel (%p220) target = $region12
      $region11: #{tpu_custom_call.1} parent=5 // pred_region
        %s224 = ssub.s32 %s23, 1
        // Predicated region
        $region13: #{tpu_custom_call.1} parent=11 // pred_check
          %p225 = pneg %p84
        $region14: #{tpu_custom_call.1} parent=11 // pred_check_branch
          %227 = sbr.rel (%p225) target = $region16
        $region15: #{tpu_custom_call.1} parent=11 // pred_region
          %s229 = ssub.s32 32, 32
          %230 = vsyncadd [#allocation6], %s229
          %s232 = sshll.u32 [#allocation5], 4
          %s233 = int_to_ptr.vmem [resolvable:$true] %s232
          %235 = dma.hbm_to_vmem [thread:$0]  %s1, 32, %s233, [#allocation6]
        $region16: #{tpu_custom_call.1} parent=11 // pred_fallthru
          _
        // Predicated region
        $region17: #{tpu_custom_call.1} parent=11 // pred_check
          %p236 = pneg %p105
        $region18: #{tpu_custom_call.1} parent=11 // pred_check_branch
          %238 = sbr.rel (%p236) target = $region20
        $region19: #{tpu_custom_call.1} parent=11 // pred_region
          %s240 = ssub.s32 256, 256
          %241 = vsyncadd [#allocation6], %s240
          %s242 = sshll.u32 [#allocation7], 4
          %s243 = int_to_ptr.vmem [resolvable:$true] %s242
          %248 = dma.hbm_to_vmem [thread:$0]  %s2, 256, %s243, [#allocation6], 64, 64, 4
        $region20: #{tpu_custom_call.1} parent=11 // pred_fallthru
          _
        // Predicated region
        $region21: #{tpu_custom_call.1} parent=11 // pred_check
          %p249 = pneg %p126
        $region22: #{tpu_custom_call.1} parent=11 // pred_check_branch
          %251 = sbr.rel (%p249) target = $region24
        $region23: #{tpu_custom_call.1} parent=11 // pred_region
          _
        $region24: #{tpu_custom_call.1} parent=11 // pred_fallthru
          _
      $region12: #{tpu_custom_call.1} parent=5 // pred_fallthru
        _
      %p252 = scmp.lt.s32.totalorder %s23, 2
      // Predicated region
      $region25: #{tpu_custom_call.1} parent=5 // pred_check
        %p253 = pneg %p252
      $region26: #{tpu_custom_call.1} parent=5 // pred_check_branch
        %255 = sbr.rel (%p253) target = $region28
      $region27: #{tpu_custom_call.1} parent=5 // pred_region
        // Predicated region
        $region29: #{tpu_custom_call.1} parent=27 // pred_check
          %p256 = pneg %p57
        $region30: #{tpu_custom_call.1} parent=27 // pred_check_branch
          %258 = sbr.rel (%p256) target = $region32
        $region31: #{tpu_custom_call.1} parent=27 // pred_region
          %s259 = sand.u32 %s47, 1
          %s260 = scalar_lea.sflag [#allocation3], %s259
          %s261 = sand.u32 %s47, 1
          %s262 = smul.addr %s261, 8
          %s263 = scalar_lea.vmem [#allocation2], %s262
          %s265 = ssub.s32 128, 128
          %266 = vsyncadd %s260, %s265
          %s267 = sadd.s32 %s31, %s30
          %s268 = smul.addr %s267, 128
          %s269 = scalar_lea.hbm %s0, %s268
          %s271 = sshll.u32 %s263, 4
          %s272 = int_to_ptr.vmem [resolvable:$true] %s271
          %274 = dma.hbm_to_vmem [thread:$0]  %s269, 128, %s272, %s260
        $region32: #{tpu_custom_call.1} parent=27 // pred_fallthru
          _
      $region28: #{tpu_custom_call.1} parent=5 // pred_fallthru
        _
      %p275 = scmp.le.s32.totalorder 1, %s23
      %p276 = scmp.lt.s32.totalorder %s23, 3
      %p277 = pnand %p275, %p276
      %p278 = pneg %p277
      // Predicated region
      $region33: #{tpu_custom_call.1} parent=5 // pred_check
        _
      $region34: #{tpu_custom_call.1} parent=5 // pred_check_branch
        %280 = sbr.rel (%p277) target = $region36
      $region35: #{tpu_custom_call.1} parent=5 // pred_region
        %s281 = ssub.s32 %s23, 1
        %s282 = sand.u32 %s50, 1
        %s283 = scalar_lea.sflag [#allocation3], %s282
        %s284 = sand.u32 %s50, 1
        %s285 = smul.addr %s284, 8
        %s286 = scalar_lea.vmem [#allocation2], %s285
        // Predicated region
        $region37: #{tpu_custom_call.1} parent=35 // pred_check
          %p287 = pneg %p63
        $region38: #{tpu_custom_call.1} parent=35 // pred_check_branch
          %289 = sbr.rel (%p287) target = $region40
        $region39: #{tpu_custom_call.1} parent=35 // pred_region
          %290 = dma.done %s283, 128
        $region40: #{tpu_custom_call.1} parent=35 // pred_fallthru
          _
        // Predicated region
        $region41: #{tpu_custom_call.1} parent=35 // pred_check
          %p291 = pneg %p84
        $region42: #{tpu_custom_call.1} parent=35 // pred_check_branch
          %293 = sbr.rel (%p291) target = $region44
        $region43: #{tpu_custom_call.1} parent=35 // pred_region
          %294 = dma.done [#allocation6], 32
        $region44: #{tpu_custom_call.1} parent=35 // pred_fallthru
          _
        // Predicated region
        $region45: #{tpu_custom_call.1} parent=35 // pred_check
          %p295 = pneg %p105
        $region46: #{tpu_custom_call.1} parent=35 // pred_check_branch
          %297 = sbr.rel (%p295) target = $region48
        $region47: #{tpu_custom_call.1} parent=35 // pred_region
          %298 = dma.done [#allocation6], 256
        $region48: #{tpu_custom_call.1} parent=35 // pred_fallthru
          _
        %s299 = sand.u32 %s50, 1
        %s300 = scalar_lea.sflag [#allocation3], %s299
        %s301 = sand.u32 %s50, 1
        %s302 = smul.addr %s301, 8
        %s303 = scalar_lea.vmem [#allocation2], %s302
        %p304 = pneg %p63
        %p305 = pneg %p60
        %p306 = pneg %p84
        %p307 = pneg %p81
        %p308 = pneg %p105
        %p309 = pneg %p102
        %p310 = pneg %p126
        %p311 = pneg %p123
        %p312 = pneg %p154
        %p313 = pneg %p151
        %s314 = sand.u32 %s141, 1
        %s315 = scalar_lea.sflag [#allocation4], %s314
        %s316 = sand.u32 %s141, 1
        %s317 = smul.addr %s316, 16
        %s318 = scalar_lea.vmem [#allocation8], %s317
        %p319 = pneg %p182
        %p320 = pneg %p179
        %s321 = sand.u32 %s28, 1
        %s322 = scalar_lea.sflag [#allocation10], %s321
        %s323 = sand.u32 %s169, 1
        %s324 = smul.addr %s323, 16
        %s325 = scalar_lea.vmem [#allocation9], %s324
        %p326 = pneg %p210
        %p327 = pneg %p207
        %s328 = sand.u32 %s28, 1
        %s329 = scalar_lea.sflag [#allocation10], %s328
        %s330 = sand.u32 %s197, 1
        %s331 = smul.addr %s330, 16
        %s332 = scalar_lea.vmem [#allocation11], %s331
        %v334 = vld [vmem:[%s286] sm:$0xff]
        %v335 = vld [vmem:[#allocation5] sm:$0x1]
        %v336 = vld [vmem:[#allocation5 + $0x1] sm:$0x1]
        %vm337 = vcmask 261120
        %v338 = vsel %vm337, %v334, 0.0
        %339 = vadd.xlane.f32.xlu0 %v338
        %v340 = vpop.xlane.xlu0 %339
        %v341 = vrcp.pop 32.0
        %v342 = vmul.f32 %v340, %v341
        %v343 = vsub.f32 %v334, %v342
        %v344 = vmul.f32 %v343, %v343
        %v345 = vsel %vm337, %v344, 0.0
        %346 = vadd.xlane.f32.xlu0 %v345
        %v347 = vpop.xlane.xlu0 %346
        %v348 = vmul.f32 %v347, %v341
        %v349 = vadd.f32 %v348, 1e-05
        %v350 = vrsqrt.pop %v349
        %v351 = vmul.f32 %v343, %v350
        %v352 = vlaneseq
        %v353 = vshrl.u32 %v352, 7
        %v354 = vsub.s32 0, %v353
        %v355 = vrot.slane %v335, %v354
        %v356 = vmul.f32 %v351, %v355
        %v357 = vlaneseq
        %v358 = vshrl.u32 %v357, 7
        %v359 = vsub.s32 0, %v358
        %v360 = vrot.slane %v336, %v359
        %v361 = vadd.f32 %v356, %v360
        %v362 = vpack.c.bf16 %v361, %v361
        %v363 = vld [vmem:[#allocation7] sm:$0xf]
        %v364 = vld [vmem:[#allocation7 + $0x4] sm:$0xf]
        %v365 = vld [vmem:[#allocation7 + $0x8] sm:$0xf]
        %v366 = vld [vmem:[#allocation7 + $0xc] sm:$0xf]
        %v367 = vld [vmem:[%s3] sm:$0x1]
        %v369 = vlaneseq
        %v370 = vshrl.u32 %v369, 7
        %v371 = vsub.s32 0, %v370
        %v372 = vrot.slane %v367, %v371
        %v378 = vunpack.c.l.b16 %v363
        %v379 = vunpack.c.l.b16 %v364
        %v380 = vunpack.c.l.b16 %v365
        %v381 = vunpack.c.l.b16 %v366
        %v382 = vpack.c.b16 %v379, %v378
        %v383 = vpack.c.b16 %v381, %v380
        %v387 = vsel %vm337, %v362, 0
        %389 = vmatprep.subr.bf16.mxu0 0
        %390 = vmatpush1.bf16.msra.mxu0 0
        %391 = vmatprep.subr.bf16.mxu0 0
        %392 = vmatpush1.bf16.msra.mxu0 0
        %393 = vmatprep.subr.bf16.mxu0 0
        %394 = vmatpush1.bf16.msra.mxu0 0
        %395 = vmatprep.subr.bf16.mxu0 0
        %396 = vmatpush1.bf16.msra.mxu0 0
        %397 = vmatprep.subr.bf16.mxu0 0
        %398 = vmatpush1.bf16.msra.mxu0 0
        %399 = vmatprep.subr.bf16.mxu0 0
        %400 = vmatpush1.bf16.msra.mxu0 0
        %401 = vmatprep.subr.bf16.mxu0 0
        %402 = vmatpush1.bf16.msra.mxu0 %v383
        %403 = vmatprep.subr.bf16.mxu0 0
        %404 = vmatpush1.bf16.msra.mxu0 %v382
        %405 = vmatprep.subr.bf16.mxu0 0
        %406 = vmatpush2.bf16.msra.mxu0 0
        %407 = vmatprep.subr.bf16.mxu0 0
        %408 = vmatpush2.bf16.msra.mxu0 0
        %409 = vmatprep.subr.bf16.mxu0 0
        %410 = vmatpush2.bf16.msra.mxu0 0
        %411 = vmatprep.subr.bf16.mxu0 0
        %412 = vmatpush2.bf16.msra.mxu0 0
        %413 = vmatprep.subr.bf16.mxu0 0
        %414 = vmatpush2.bf16.msra.mxu0 0
        %415 = vmatprep.subr.bf16.mxu0 0
        %416 = vmatpush2.bf16.msra.mxu0 0
        %417 = vmatprep.subr.bf16.mxu0 0
        %418 = vmatpush2.bf16.msra.mxu0 0
        %419 = vmatprep.subr.bf16.mxu0 0
        %420 = vmatpush2.bf16.msra.mxu0 0
        %421 = vmatprep.mubr.bf16.mxu0 0
        %422 = vmatmul.mubr.bf16.gmra.mxu0 %v387
        %v423 = vpop.f32.mrf.mxu0
        %v424 = vadd.f32 %v372, %v423
        %v425 = vpop.f32.mrf.mxu0
        %v426 = vpop.f32.mrf.mxu0
        %v427 = vpop.f32.mrf.mxu0
        %428 = vdwg.mxu0
        %v429 = vmul.f32 %v424, 0.35355338
        %v430 = vpack.c.bf16 %v429, %v429
        %vm431 = vcmask 60416
        %432 = vst.msk [vmem:[%s318] sm:$0xf] %vm431, %v430
        %v433 = vpack.c.bf16 %v424, %v424
        %v435 = vunpack.c.l.b16 %v433
        %v436 = vpack.c.b16 %v435, %v435
        %437 = vrot.lane.b32.xlu0 %v436, 96
        %v438 = vpop.permute.xlu0 %437
        %440 = vst.msk [vmem:[%s325] sm:$0xf] %vm431, %v438
        %441 = vrot.lane.b32.xlu0 %v436, 64
        %v442 = vpop.permute.xlu0 %441
        %444 = vst.msk [vmem:[%s332] sm:$0xf] %vm431, %v442
        %v446 = vunpack.c.l.b16 %v430
        %v447 = vpack.c.b16 %v446, %v446
        %448 = vrot.lane.b32.xlu0 %v447, 120
        %v449 = vpop.permute.xlu0 %448
        %s451 = scalar_lea.vmem %s318, 4 [#allocation8]
        %452 = vst.msk [vmem:[%s451] sm:$0xf] %vm431, %v449
        %453 = vrot.lane.b32.xlu0 %v436, 88
        %v454 = vpop.permute.xlu0 %453
        %s456 = scalar_lea.vmem %s325, 4 [#allocation9]
        %457 = vst.msk [vmem:[%s456] sm:$0xf] %vm431, %v454
        %458 = vrot.lane.b32.xlu0 %v436, 56
        %v459 = vpop.permute.xlu0 %458
        %s461 = scalar_lea.vmem %s332, 4 [#allocation11]
        %462 = vst.msk [vmem:[%s461] sm:$0xf] %vm431, %v459
        %463 = vrot.lane.b32.xlu0 %v447, 112
        %v464 = vpop.permute.xlu0 %463
        %s466 = scalar_lea.vmem %s318, 8 [#allocation8]
        %467 = vst.msk [vmem:[%s466] sm:$0xf] %vm431, %v464
        %468 = vrot.lane.b32.xlu0 %v436, 80
        %v469 = vpop.permute.xlu0 %468
        %s471 = scalar_lea.vmem %s325, 8 [#allocation9]
        %472 = vst.msk [vmem:[%s471] sm:$0xf] %vm431, %v469
        %473 = vrot.lane.b32.xlu0 %v436, 48
        %v474 = vpop.permute.xlu0 %473
        %s476 = scalar_lea.vmem %s332, 8 [#allocation11]
        %477 = vst.msk [vmem:[%s476] sm:$0xf] %vm431, %v474
        %478 = vrot.lane.b32.xlu0 %v447, 104
        %v479 = vpop.permute.xlu0 %478
        %s481 = scalar_lea.vmem %s318, 12 [#allocation8]
        %482 = vst.msk [vmem:[%s481] sm:$0xf] %vm431, %v479
        %483 = vrot.lane.b32.xlu0 %v436, 72
        %v484 = vpop.permute.xlu0 %483
        %s486 = scalar_lea.vmem %s325, 12 [#allocation9]
        %487 = vst.msk [vmem:[%s486] sm:$0xf] %vm431, %v484
        %488 = vrot.lane.b32.xlu0 %v436, 40
        %v489 = vpop.permute.xlu0 %488
        %s491 = scalar_lea.vmem %s332, 12 [#allocation11]
        %492 = vst.msk [vmem:[%s491] sm:$0xf] %vm431, %v489
        %s493 = sand.u32 %s141, 1
        %s494 = scalar_lea.sflag [#allocation4], %s493
        %s495 = sand.u32 %s141, 1
        %s496 = smul.addr %s495, 16
        %s497 = scalar_lea.vmem [#allocation8], %s496
        %s498 = sand.u32 %s28, 1
        %s499 = scalar_lea.sflag [#allocation10], %s498
        %s500 = sand.u32 %s169, 1
        %s501 = smul.addr %s500, 16
        %s502 = scalar_lea.vmem [#allocation9], %s501
        %s503 = sand.u32 %s28, 1
        %s504 = scalar_lea.sflag [#allocation10], %s503
        %s505 = sand.u32 %s197, 1
        %s506 = smul.addr %s505, 16
        %s507 = scalar_lea.vmem [#allocation11], %s506
        // Predicated region
        $region49: #{tpu_custom_call.1} parent=35 // pred_check
          %p508 = pneg %p151
        $region50: #{tpu_custom_call.1} parent=35 // pred_check_branch
          %510 = sbr.rel (%p508) target = $region52
        $region51: #{tpu_custom_call.1} parent=35 // pred_region
          %s512 = ssub.s32 256, 256
          %513 = vsyncadd %s494, %s512
          %s514 = smul.addr %s32, 4
          %s515 = sadd.s32 %s33, %s514
          %s516 = smul.addr %s515, 64
          %s517 = scalar_lea.hbm %s4, %s516
          %s518 = sshll.u32 %s497, 4
          %s519 = int_to_ptr.vmem [resolvable:$true] %s518
          %524 = dma.vmem_to_hbm [thread:$0]  %s519, 256, %s517, %s494, 64, 64, 4
        $region52: #{tpu_custom_call.1} parent=35 // pred_fallthru
          _
        // Predicated region
        $region53: #{tpu_custom_call.1} parent=35 // pred_check
          %p525 = pneg %p179
        $region54: #{tpu_custom_call.1} parent=35 // pred_check_branch
          %527 = sbr.rel (%p525) target = $region56
        $region55: #{tpu_custom_call.1} parent=35 // pred_region
          %s529 = ssub.s32 256, 256
          %530 = vsyncadd %s499, %s529
          %s531 = smul.addr %s32, 4
          %s532 = sadd.s32 %s33, %s531
          %s533 = smul.addr %s532, 64
          %s534 = scalar_lea.hbm %s5, %s533
          %s535 = sshll.u32 %s502, 4
          %s536 = int_to_ptr.vmem [resolvable:$true] %s535
          %541 = dma.vmem_to_hbm [thread:$0]  %s536, 256, %s534, %s499, 64, 64, 4
        $region56: #{tpu_custom_call.1} parent=35 // pred_fallthru
          _
        // Predicated region
        $region57: #{tpu_custom_call.1} parent=35 // pred_check
          %p542 = pneg %p207
        $region58: #{tpu_custom_call.1} parent=35 // pred_check_branch
          %544 = sbr.rel (%p542) target = $region60
        $region59: #{tpu_custom_call.1} parent=35 // pred_region
          %s546 = ssub.s32 256, 256
          %547 = vsyncadd %s504, %s546
          %s548 = smul.addr %s32, 4
          %s549 = sadd.s32 %s33, %s548
          %s550 = smul.addr %s549, 64
          %s551 = scalar_lea.hbm %s6, %s550
          %s552 = sshll.u32 %s507, 4
          %s553 = int_to_ptr.vmem [resolvable:$true] %s552
          %558 = dma.vmem_to_hbm [thread:$0]  %s553, 256, %s551, %s504, 64, 64, 4
        $region60: #{tpu_custom_call.1} parent=35 // pred_fallthru
          _
      $region36: #{tpu_custom_call.1} parent=5 // pred_fallthru
        _
      %p559 = scmp.le.s32.totalorder 2, %s23
      // Predicated region
      $region61: #{tpu_custom_call.1} parent=5 // pred_check
        %p560 = pneg %p559
      $region62: #{tpu_custom_call.1} parent=5 // pred_check_branch
        %562 = sbr.rel (%p560) target = $region64
      $region63: #{tpu_custom_call.1} parent=5 // pred_region
        %s563 = ssub.s32 %s23, 2
        // Predicated region
        $region65: #{tpu_custom_call.1} parent=63 // pred_check
          %p564 = pneg %p157
        $region66: #{tpu_custom_call.1} parent=63 // pred_check_branch
          %566 = sbr.rel (%p564) target = $region68
        $region67: #{tpu_custom_call.1} parent=63 // pred_region
          %s567 = sand.u32 %s142, 1
          %s568 = scalar_lea.sflag [#allocation4], %s567
          %s569 = sand.u32 %s142, 1
          %s570 = smul.addr %s569, 16
          %s571 = scalar_lea.vmem [#allocation8], %s570
          %572 = dma.done %s568, 256
        $region68: #{tpu_custom_call.1} parent=63 // pred_fallthru
          _
        // Predicated region
        $region69: #{tpu_custom_call.1} parent=63 // pred_check
          %p573 = pneg %p185
        $region70: #{tpu_custom_call.1} parent=63 // pred_check_branch
          %575 = sbr.rel (%p573) target = $region72
        $region71: #{tpu_custom_call.1} parent=63 // pred_region
          %s576 = sand.u32 %s29, 1
          %s577 = scalar_lea.sflag [#allocation10], %s576
          %s578 = sand.u32 %s170, 1
          %s579 = smul.addr %s578, 16
          %s580 = scalar_lea.vmem [#allocation9], %s579
          %581 = dma.done %s577, 256
        $region72: #{tpu_custom_call.1} parent=63 // pred_fallthru
          _
        // Predicated region
        $region73: #{tpu_custom_call.1} parent=63 // pred_check
          %p582 = pneg %p213
        $region74: #{tpu_custom_call.1} parent=63 // pred_check_branch
          %584 = sbr.rel (%p582) target = $region76
        $region75: #{tpu_custom_call.1} parent=63 // pred_region
          %s585 = sand.u32 %s29, 1
          %s586 = scalar_lea.sflag [#allocation10], %s585
          %s587 = sand.u32 %s198, 1
          %s588 = smul.addr %s587, 16
          %s589 = scalar_lea.vmem [#allocation11], %s588
          %590 = dma.done %s586, 256
        $region76: #{tpu_custom_call.1} parent=63 // pred_fallthru
          _
      $region64: #{tpu_custom_call.1} parent=5 // pred_fallthru
        _
    $region6: #{tpu_custom_call.1} parent=1 // loop_footer
      %s27 = sadd.s32 1, %s23
    $region7: #{tpu_custom_call.1} parent=1 // loop_footer_branch
      %22 = sbr.rel target = $region3
    $region8: #{tpu_custom_call.1} parent=1 // loop_exit
      _
    %591 = vsyncpa [#allocation3], 1
    %s592 = scalar_lea.sflag [#allocation3], 1
    %593 = vsyncpa %s592, 1
    %594 = vsyncpa [#allocation6], 1
    %595 = vsyncpa [#allocation4], 1
    %s596 = scalar_lea.sflag [#allocation4], 1
    %597 = vsyncpa %s596, 1
    %598 = vsyncpa [#allocation10], 1
    %s599 = scalar_lea.sflag [#allocation10], 1
    %600 = vsyncpa %s599, 1

// kernel: tpu_custom_call.1
$region0: #{tpu_custom_call.1}
  #allocation0 [shape = 'u32[]', space=smem, size = 0x4, offset = 0x4, fixed_abs, tag = 'smem constant byte address 0x4 - core index']
  #allocation1 [shape = 'u32[144,128]{1,0:T(1,128)}', space=vmem, size = 0x12000, scoped, tag = 'internal scratch']
  %s0 = inlined_call_operand.hbm [shape: f32[2,8,32], index: 0, kind: input, shape index: {}]
  %s1 = inlined_call_operand.hbm [shape: f32[2,32], index: 1, kind: input, shape index: {}]
  %s2 = inlined_call_operand.hbm [shape: bf16[32,96], index: 2, kind: input, shape index: {}]
  %s3 = inlined_call_operand.vmem [shape: f32[1,96], index: 3, kind: input, shape index: {}]
  %s4 = inlined_call_operand.hbm [shape: bf16[2,4,8,8], index: 4, kind: output, shape index: {0}]
  %s5 = inlined_call_operand.hbm [shape: bf16[2,4,8,8], index: 5, kind: output, shape index: {1}]
  %s6 = inlined_call_operand.hbm [shape: bf16[2,4,8,8], index: 6, kind: output, shape index: {2}]
  %7 = xla_tuple %s4, %s5, %s6
  %s8 = sld [smem:[#allocation0]]
  $region77: #{tpu_custom_call.1} parent=0
    _
  %s10 = ssub.s32 1, %s8
  %s11 = scalar_select 0, %s10, %s8
  $region1: #{tpu_custom_call.1} parent=0
    #allocation2 [shape = 'u8[8192]{0}', space=vmem, size = 0x2000, scoped, tag = 'input window, operand 0']
    #allocation3 [shape = 's32[2]{0}', space=sflag, size = 0x8, scoped, tag = 'scoped memory for tpu_custom_call.1']
    #allocation4 [shape = 's32[2]{0}', space=sflag, size = 0x8, scoped, tag = 'scoped memory for tpu_custom_call.1']
    #allocation5 [shape = 'u8[1024]{0}', space=vmem, size = 0x400, scoped, tag = 'input window, operand 1, single buffered']
    #allocation6 [shape = 's32[1]{0}', space=sflag, size = 0x4, scoped, tag = 'scoped memory for tpu_custom_call.1']
    #allocation7 [shape = 'u8[8192]{0}', space=vmem, size = 0x2000, scoped, tag = 'input window, operand 2, single buffered']
    #allocation8 [shape = 'u8[16384]{0}', space=vmem, size = 0x4000, scoped, tag = 'output window, operand 0']
    #allocation9 [shape = 'u8[16384]{0}', space=vmem, size = 0x4000, scoped, tag = 'output window, operand 1']
    #allocation10 [shape = 's32[2]{0}', space=sflag, size = 0x8, scoped, tag = 'scoped memory for tpu_custom_call.1']
    #allocation11 [shape = 'u8[16384]{0}', space=vmem, size = 0x4000, scoped, tag = 'output window, operand 2']
    %12 = vsyncpa [#allocation3], 0
    %s13 = scalar_lea.sflag [#allocation3], 1
    %14 = vsyncpa %s13, 0
    %15 = vsyncpa [#allocation6], 0
    %16 = vsyncpa [#allocation4], 0
    %s17 = scalar_lea.sflag [#allocation4], 1
    %18 = vsyncpa %s17, 0
    %19 = vsyncpa [#allocation10], 0
    %s20 = scalar_lea.sflag [#allocation10], 1
    %21 = vsyncpa %s20, 0
    loop: start=0, step=1, limit=4
    $region2: #{tpu_custom_call.1} parent=1 // loop_pre_header
      _
    $region3: #{tpu_custom_call.1} parent=1 // loop_header
      %s23 = sphi 0, %s27
      %p24 = scmp.ge.s32.totalorder %s23, 4
      %s30 = sphi 0, %s42
      %s31 = sphi 0, %s38
      %s32 = sphi 0, %s30
      %s33 = sphi 0, %s31
      %s34 = sphi 0, %s32
      %s35 = sphi 0, %s33
      %s47 = sphi 0, %s49
      %s50 = sphi 0, %s47
      %s51 = sphi 0, %s50
      %s67 = sphi 0, %s51
      %s71 = sphi 0, %s71
      %s73 = sphi 0, %s71
      %s74 = sphi 0, %s73
      %s88 = sphi 0, %s74
      %s92 = sphi 0, %s92
      %s94 = sphi 0, %s92
      %s95 = sphi 0, %s94
      %s109 = sphi 0, %s95
      %s113 = sphi 0, %s113
      %s115 = sphi 0, %s113
      %s116 = sphi 0, %s115
      %s130 = sphi 0, %s116
      %s138 = sphi 0, %s140
      %s141 = sphi 0, %s138
      %s142 = sphi 0, %s141
      %s158 = sphi 0, %s142
      %s166 = sphi 0, %s168
      %s169 = sphi 0, %s166
      %s170 = sphi 0, %s169
      %s186 = sphi 0, %s170
      %s194 = sphi 0, %s196
      %s197 = sphi 0, %s194
      %s198 = sphi 0, %s197
      %s214 = sphi 0, %s198
    $region4: #{tpu_custom_call.1} parent=1 // loop_header_branch
      %26 = sbr.rel (%p24) target = $region8
    $region5: #{tpu_custom_call.1} parent=1 // loop_body
      %s28 = ssub.s32 %s23, 1
      %s29 = ssub.s32 %s23, 2
      %s36 = sadd.s32 1, %s31
      %p37 = scmp.ge.s32.totalorder %s36, 1
      %s38 = scalar_select %p37, 0, %s36
      %s39 = sadd.s32 1, %s30
      %s40 = scalar_select %p37, %s39, %s30
      %p41 = scmp.ge.s32.totalorder %s40, 2
      %s42 = scalar_select %p41, 0, %s40
      %s43 = ssub.s32 %s30, %s42
      %s44 = ssub.s32 %s31, %s38
      %s45 = sor.u32 %s43, %s44
      %p46 = scmp.eq.s32.totalorder %s45, 0
      %s48 = sadd.s32 %s47, 1
      %s49 = scalar_select %p46, %s47, %s48
      %p52 = pneg %p46
      %p53 = scmp.eq.s32.totalorder %s23, 1
      %p54 = por %p52, %p53
      %p55 = scmp.ne.s32.totalorder %s47, %s50
      %p56 = scmp.eq.s32.totalorder %s23, 0
      %p57 = por %p55, %p56
      %p58 = scmp.ne.s32.totalorder %s47, %s50
      %p59 = scmp.eq.s32.totalorder %s28, 1
      %p60 = por %p58, %p59
      %p61 = scmp.ne.s32.totalorder %s50, %s51
      %p62 = scmp.eq.s32.totalorder %s28, 0
      %p63 = por %p61, %p62
      %p64 = scmp.ne.s32.totalorder %s50, %s51
      %p65 = scmp.eq.s32.totalorder %s29, 1
      %p66 = por %p64, %p65
      %p68 = scmp.ne.s32.totalorder %s51, %s67
      %p69 = scmp.eq.s32.totalorder %s29, 0
      %p70 = por %p68, %p69
      %s72 = sadd.s32 %s71, 1
      %p75 = scmp.eq.s32.totalorder %s23, 1
      %p76 = scmp.ne.s32.totalorder %s71, %s73
      %p77 = scmp.eq.s32.totalorder %s23, 0
      %p78 = por %p76, %p77
      %p79 = scmp.ne.s32.totalorder %s71, %s73
      %p80 = scmp.eq.s32.totalorder %s28, 1
      %p81 = por %p79, %p80
      %p82 = scmp.ne.s32.totalorder %s73, %s74
      %p83 = scmp.eq.s32.totalorder %s28, 0
      %p84 = por %p82, %p83
      %p85 = scmp.ne.s32.totalorder %s73, %s74
      %p86 = scmp.eq.s32.totalorder %s29, 1
      %p87 = por %p85, %p86
      %p89 = scmp.ne.s32.totalorder %s74, %s88
      %p90 = scmp.eq.s32.totalorder %s29, 0
      %p91 = por %p89, %p90
      %s93 = sadd.s32 %s92, 1
      %p96 = scmp.eq.s32.totalorder %s23, 1
      %p97 = scmp.ne.s32.totalorder %s92, %s94
      %p98 = scmp.eq.s32.totalorder %s23, 0
      %p99 = por %p97, %p98
      %p100 = scmp.ne.s32.totalorder %s92, %s94
      %p101 = scmp.eq.s32.totalorder %s28, 1
      %p102 = por %p100, %p101
      %p103 = scmp.ne.s32.totalorder %s94, %s95
      %p104 = scmp.eq.s32.totalorder %s28, 0
      %p105 = por %p103, %p104
      %p106 = scmp.ne.s32.totalorder %s94, %s95
      %p107 = scmp.eq.s32.totalorder %s29, 1
      %p108 = por %p106, %p107
      %p110 = scmp.ne.s32.totalorder %s95, %s109
      %p111 = scmp.eq.s32.totalorder %s29, 0
      %p112 = por %p110, %p111
      %s114 = sadd.s32 %s113, 1
      %p117 = scmp.eq.s32.totalorder %s23, 1
      %p118 = scmp.ne.s32.totalorder %s113, %s115
      %p119 = scmp.eq.s32.totalorder %s23, 0
      %p120 = por %p118, %p119
      %p121 = scmp.ne.s32.totalorder %s113, %s115
      %p122 = scmp.eq.s32.totalorder %s28, 1
      %p123 = por %p121, %p122
      %p124 = scmp.ne.s32.totalorder %s115, %s116
      %p125 = scmp.eq.s32.totalorder %s28, 0
      %p126 = por %p124, %p125
      %p127 = scmp.ne.s32.totalorder %s115, %s116
      %p128 = scmp.eq.s32.totalorder %s29, 1
      %p129 = por %p127, %p128
      %p131 = scmp.ne.s32.totalorder %s116, %s130
      %p132 = scmp.eq.s32.totalorder %s29, 0
      %p133 = por %p131, %p132
      %s134 = ssub.s32 %s30, %s42
      %s135 = ssub.s32 %s31, %s38
      %s136 = sor.u32 %s134, %s135
      %p137 = scmp.eq.s32.totalorder %s136, 0
      %s139 = sadd.s32 %s138, 1
      %s140 = scalar_select %p137, %s138, %s139
      %p143 = pneg %p137
      %p144 = scmp.eq.s32.totalorder %s23, 1
      %p145 = por %p143, %p144
      %p146 = scmp.ne.s32.totalorder %s138, %s141
      %p147 = scmp.eq.s32.totalorder %s23, 0
      %p148 = por %p146, %p147
      %p149 = scmp.ne.s32.totalorder %s138, %s141
      %p150 = scmp.eq.s32.totalorder %s28, 1
      %p151 = por %p149, %p150
      %p152 = scmp.ne.s32.totalorder %s141, %s142
      %p153 = scmp.eq.s32.totalorder %s28, 0
      %p154 = por %p152, %p153
      %p155 = scmp.ne.s32.totalorder %s141, %s142
      %p156 = scmp.eq.s32.totalorder %s29, 1
      %p157 = por %p155, %p156
      %p159 = scmp.ne.s32.totalorder %s142, %s158
      %p160 = scmp.eq.s32.totalorder %s29, 0
      %p161 = por %p159, %p160
      %s162 = ssub.s32 %s30, %s42
      %s163 = ssub.s32 %s31, %s38
      %s164 = sor.u32 %s162, %s163
      %p165 = scmp.eq.s32.totalorder %s164, 0
      %s167 = sadd.s32 %s166, 1
      %s168 = scalar_select %p165, %s166, %s167
      %p171 = pneg %p165
      %p172 = scmp.eq.s32.totalorder %s23, 1
      %p173 = por %p171, %p172
      %p174 = scmp.ne.s32.totalorder %s166, %s169
      %p175 = scmp.eq.s32.totalorder %s23, 0
      %p176 = por %p174, %p175
      %p177 = scmp.ne.s32.totalorder %s166, %s169
      %p178 = scmp.eq.s32.totalorder %s28, 1
      %p179 = por %p177, %p178
      %p180 = scmp.ne.s32.totalorder %s169, %s170
      %p181 = scmp.eq.s32.totalorder %s28, 0
      %p182 = por %p180, %p181
      %p183 = scmp.ne.s32.totalorder %s169, %s170
      %p184 = scmp.eq.s32.totalorder %s29, 1
      %p185 = por %p183, %p184
      %p187 = scmp.ne.s32.totalorder %s170, %s186
      %p188 = scmp.eq.s32.totalorder %s29, 0
      %p189 = por %p187, %p188
      %s190 = ssub.s32 %s30, %s42
      %s191 = ssub.s32 %s31, %s38
      %s192 = sor.u32 %s190, %s191
      %p193 = scmp.eq.s32.totalorder %s192, 0
      %s195 = sadd.s32 %s194, 1
      %s196 = scalar_select %p193, %s194, %s195
      %p199 = pneg %p193
      %p200 = scmp.eq.s32.totalorder %s23, 1
      %p201 = por %p199, %p200
      %p202 = scmp.ne.s32.totalorder %s194, %s197
      %p203 = scmp.eq.s32.totalorder %s23, 0
      %p204 = por %p202, %p203
      %p205 = scmp.ne.s32.totalorder %s194, %s197
      %p206 = scmp.eq.s32.totalorder %s28, 1
      %p207 = por %p205, %p206
      %p208 = scmp.ne.s32.totalorder %s197, %s198
      %p209 = scmp.eq.s32.totalorder %s28, 0
      %p210 = por %p208, %p209
      %p211 = scmp.ne.s32.totalorder %s197, %s198
      %p212 = scmp.eq.s32.totalorder %s29, 1
      %p213 = por %p211, %p212
      %p215 = scmp.ne.s32.totalorder %s198, %s214
      %p216 = scmp.eq.s32.totalorder %s29, 0
      %p217 = por %p215, %p216
      %p218 = scmp.le.s32.totalorder 1, %s23
      %p219 = scmp.lt.s32.totalorder %s23, 3
      %p220 = pnand %p218, %p219
      %p221 = pneg %p220
      // Predicated region
      $region9: #{tpu_custom_call.1} parent=5 // pred_check
        _
      $region10: #{tpu_custom_call.1} parent=5 // pred_check_branch
        %223 = sbr.rel (%p220) target = $region12
      $region11: #{tpu_custom_call.1} parent=5 // pred_region
        %s224 = ssub.s32 %s23, 1
        // Predicated region
        $region13: #{tpu_custom_call.1} parent=11 // pred_check
          %p225 = pneg %p84
        $region14: #{tpu_custom_call.1} parent=11 // pred_check_branch
          %227 = sbr.rel (%p225) target = $region16
        $region15: #{tpu_custom_call.1} parent=11 // pred_region
          %s229 = ssub.s32 32, 32
          %230 = vsyncadd [#allocation6], %s229
          %s232 = sshll.u32 [#allocation5], 4
          %s233 = int_to_ptr.vmem [resolvable:$true] %s232
          %235 = dma.hbm_to_vmem [thread:$0]  %s1, 32, %s233, [#allocation6]
        $region16: #{tpu_custom_call.1} parent=11 // pred_fallthru
          _
        // Predicated region
        $region17: #{tpu_custom_call.1} parent=11 // pred_check
          %p236 = pneg %p105
        $region18: #{tpu_custom_call.1} parent=11 // pred_check_branch
          %238 = sbr.rel (%p236) target = $region20
        $region19: #{tpu_custom_call.1} parent=11 // pred_region
          %s240 = ssub.s32 256, 256
          %241 = vsyncadd [#allocation6], %s240
          %s242 = sshll.u32 [#allocation7], 4
          %s243 = int_to_ptr.vmem [resolvable:$true] %s242
          %248 = dma.hbm_to_vmem [thread:$0]  %s2, 256, %s243, [#allocation6], 64, 64, 4
        $region20: #{tpu_custom_call.1} parent=11 // pred_fallthru
          _
        // Predicated region
        $region21: #{tpu_custom_call.1} parent=11 // pred_check
          %p249 = pneg %p126
        $region22: #{tpu_custom_call.1} parent=11 // pred_check_branch
          %251 = sbr.rel (%p249) target = $region24
        $region23: #{tpu_custom_call.1} parent=11 // pred_region
          _
        $region24: #{tpu_custom_call.1} parent=11 // pred_fallthru
          _
      $region12: #{tpu_custom_call.1} parent=5 // pred_fallthru
        _
      %p252 = scmp.lt.s32.totalorder %s23, 2
      // Predicated region
      $region25: #{tpu_custom_call.1} parent=5 // pred_check
        %p253 = pneg %p252
      $region26: #{tpu_custom_call.1} parent=5 // pred_check_branch
        %255 = sbr.rel (%p253) target = $region28
      $region27: #{tpu_custom_call.1} parent=5 // pred_region
        // Predicated region
        $region29: #{tpu_custom_call.1} parent=27 // pred_check
          %p256 = pneg %p57
        $region30: #{tpu_custom_call.1} parent=27 // pred_check_branch
          %258 = sbr.rel (%p256) target = $region32
        $region31: #{tpu_custom_call.1} parent=27 // pred_region
          %s259 = sand.u32 %s47, 1
          %s260 = scalar_lea.sflag [#allocation3], %s259
          %s261 = sand.u32 %s47, 1
          %s262 = smul.addr %s261, 8
          %s263 = scalar_lea.vmem [#allocation2], %s262
          %s265 = ssub.s32 128, 128
          %266 = vsyncadd %s260, %s265
          %s267 = sadd.s32 %s31, %s30
          %s268 = smul.addr %s267, 128
          %s269 = scalar_lea.hbm %s0, %s268
          %s271 = sshll.u32 %s263, 4
          %s272 = int_to_ptr.vmem [resolvable:$true] %s271
          %274 = dma.hbm_to_vmem [thread:$0]  %s269, 128, %s272, %s260
        $region32: #{tpu_custom_call.1} parent=27 // pred_fallthru
          _
      $region28: #{tpu_custom_call.1} parent=5 // pred_fallthru
        _
      %p275 = scmp.le.s32.totalorder 1, %s23
      %p276 = scmp.lt.s32.totalorder %s23, 3
      %p277 = pnand %p275, %p276
      %p278 = pneg %p277
      // Predicated region
      $region33: #{tpu_custom_call.1} parent=5 // pred_check
        _
      $region34: #{tpu_custom_call.1} parent=5 // pred_check_branch
        %280 = sbr.rel (%p277) target = $region36
      $region35: #{tpu_custom_call.1} parent=5 // pred_region
        %s281 = ssub.s32 %s23, 1
        %s282 = sand.u32 %s50, 1
        %s283 = scalar_lea.sflag [#allocation3], %s282
        %s284 = sand.u32 %s50, 1
        %s285 = smul.addr %s284, 8
        %s286 = scalar_lea.vmem [#allocation2], %s285
        // Predicated region
        $region37: #{tpu_custom_call.1} parent=35 // pred_check
          %p287 = pneg %p63
        $region38: #{tpu_custom_call.1} parent=35 // pred_check_branch
          %289 = sbr.rel (%p287) target = $region40
        $region39: #{tpu_custom_call.1} parent=35 // pred_region
          %290 = dma.done %s283, 128
        $region40: #{tpu_custom_call.1} parent=35 // pred_fallthru
          _
        // Predicated region
        $region41: #{tpu_custom_call.1} parent=35 // pred_check
          %p291 = pneg %p84
        $region42: #{tpu_custom_call.1} parent=35 // pred_check_branch
          %293 = sbr.rel (%p291) target = $region44
        $region43: #{tpu_custom_call.1} parent=35 // pred_region
          %294 = dma.done [#allocation6], 32
        $region44: #{tpu_custom_call.1} parent=35 // pred_fallthru
          _
        // Predicated region
        $region45: #{tpu_custom_call.1} parent=35 // pred_check
          %p295 = pneg %p105
        $region46: #{tpu_custom_call.1} parent=35 // pred_check_branch
          %297 = sbr.rel (%p295) target = $region48
        $region47: #{tpu_custom_call.1} parent=35 // pred_region
          %298 = dma.done [#allocation6], 256
        $region48: #{tpu_custom_call.1} parent=35 // pred_fallthru
          _
        %s299 = sand.u32 %s50, 1
        %s300 = scalar_lea.sflag [#allocation3], %s299
        %s301 = sand.u32 %s50, 1
        %s302 = smul.addr %s301, 8
        %s303 = scalar_lea.vmem [#allocation2], %s302
        %p304 = pneg %p63
        %p305 = pneg %p60
        %p306 = pneg %p84
        %p307 = pneg %p81
        %p308 = pneg %p105
        %p309 = pneg %p102
        %p310 = pneg %p126
        %p311 = pneg %p123
        %p312 = pneg %p154
        %p313 = pneg %p151
        %s314 = sand.u32 %s141, 1
        %s315 = scalar_lea.sflag [#allocation4], %s314
        %s316 = sand.u32 %s141, 1
        %s317 = smul.addr %s316, 16
        %s318 = scalar_lea.vmem [#allocation8], %s317
        %p319 = pneg %p182
        %p320 = pneg %p179
        %s321 = sand.u32 %s28, 1
        %s322 = scalar_lea.sflag [#allocation10], %s321
        %s323 = sand.u32 %s169, 1
        %s324 = smul.addr %s323, 16
        %s325 = scalar_lea.vmem [#allocation9], %s324
        %p326 = pneg %p210
        %p327 = pneg %p207
        %s328 = sand.u32 %s28, 1
        %s329 = scalar_lea.sflag [#allocation10], %s328
        %s330 = sand.u32 %s197, 1
        %s331 = smul.addr %s330, 16
        %s332 = scalar_lea.vmem [#allocation11], %s331
        %v334 = vld [vmem:[%s286] sm:$0xff]
        %v335 = vld [vmem:[#allocation5] sm:$0x1]
        %v336 = vld [vmem:[#allocation5 + $0x1] sm:$0x1]
        %vm337 = vcmask 261120
        %v338 = vsel %vm337, %v334, 0.0
        %339 = vadd.xlane.f32.xlu0 %v338
        %v340 = vpop.xlane.xlu0 %339
        %v341 = vrcp.pop 32.0
        %v342 = vmul.f32 %v340, %v341
        %v343 = vsub.f32 %v334, %v342
        %v344 = vmul.f32 %v343, %v343
        %v345 = vsel %vm337, %v344, 0.0
        %346 = vadd.xlane.f32.xlu0 %v345
        %v347 = vpop.xlane.xlu0 %346
        %v348 = vmul.f32 %v347, %v341
        %v349 = vadd.f32 %v348, 1e-05
        %v350 = vrsqrt.pop %v349
        %v351 = vmul.f32 %v343, %v350
        %v352 = vlaneseq
        %v353 = vshrl.u32 %v352, 7
        %v354 = vsub.s32 0, %v353
        %v355 = vrot.slane %v335, %v354
        %v356 = vmul.f32 %v351, %v355
        %v357 = vlaneseq
        %v358 = vshrl.u32 %v357, 7
        %v359 = vsub.s32 0, %v358
        %v360 = vrot.slane %v336, %v359
        %v361 = vadd.f32 %v356, %v360
        %v362 = vpack.c.bf16 %v361, %v361
        %v363 = vld [vmem:[#allocation7] sm:$0xf]
        %v364 = vld [vmem:[#allocation7 + $0x4] sm:$0xf]
        %v365 = vld [vmem:[#allocation7 + $0x8] sm:$0xf]
        %v366 = vld [vmem:[#allocation7 + $0xc] sm:$0xf]
        %v367 = vld [vmem:[%s3] sm:$0x1]
        %v369 = vlaneseq
        %v370 = vshrl.u32 %v369, 7
        %v371 = vsub.s32 0, %v370
        %v372 = vrot.slane %v367, %v371
        %v378 = vunpack.c.l.b16 %v363
        %v379 = vunpack.c.l.b16 %v364
        %v380 = vunpack.c.l.b16 %v365
        %v381 = vunpack.c.l.b16 %v366
        %v382 = vpack.c.b16 %v379, %v378
        %v383 = vpack.c.b16 %v381, %v380
        %v387 = vsel %vm337, %v362, 0
        %389 = vmatprep.subr.bf16.mxu0 0
        %390 = vmatpush1.bf16.msra.mxu0 0
        %391 = vmatprep.subr.bf16.mxu0 0
        %392 = vmatpush1.bf16.msra.mxu0 0
        %393 = vmatprep.subr.bf16.mxu0 0
        %394 = vmatpush1.bf16.msra.mxu0 0
        %395 = vmatprep.subr.bf16.mxu0 0
        %396 = vmatpush1.bf16.msra.mxu0 0
        %397 = vmatprep.subr.bf16.mxu0 0
        %398 = vmatpush1.bf16.msra.mxu0 0
        %399 = vmatprep.subr.bf16.mxu0 0
        %400 = vmatpush1.bf16.msra.mxu0 0
        %401 = vmatprep.subr.bf16.mxu0 0
        %402 = vmatpush1.bf16.msra.mxu0 %v383
        %403 = vmatprep.subr.bf16.mxu0 0
        %404 = vmatpush1.bf16.msra.mxu0 %v382
        %405 = vmatprep.subr.bf16.mxu0 0
        %406 = vmatpush2.bf16.msra.mxu0 0
        %407 = vmatprep.subr.bf16.mxu0 0
        %408 = vmatpush2.bf16.msra.mxu0 0
        %409 = vmatprep.subr.bf16.mxu0 0
        %410 = vmatpush2.bf16.msra.mxu0 0
        %411 = vmatprep.subr.bf16.mxu0 0
        %412 = vmatpush2.bf16.msra.mxu0 0
        %413 = vmatprep.subr.bf16.mxu0 0
        %414 = vmatpush2.bf16.msra.mxu0 0
        %415 = vmatprep.subr.bf16.mxu0 0
        %416 = vmatpush2.bf16.msra.mxu0 0
        %417 = vmatprep.subr.bf16.mxu0 0
        %418 = vmatpush2.bf16.msra.mxu0 0
        %419 = vmatprep.subr.bf16.mxu0 0
        %420 = vmatpush2.bf16.msra.mxu0 0
        %421 = vmatprep.mubr.bf16.mxu0 0
        %422 = vmatmul.mubr.bf16.gmra.mxu0 %v387
        %v423 = vpop.f32.mrf.mxu0
        %v424 = vadd.f32 %v372, %v423
        %v425 = vpop.f32.mrf.mxu0
        %v426 = vpop.f32.mrf.mxu0
        %v427 = vpop.f32.mrf.mxu0
        %428 = vdwg.mxu0
        %v429 = vmul.f32 %v424, 0.35355338
        %v430 = vpack.c.bf16 %v429, %v429
        %vm431 = vcmask 60416
        %432 = vst.msk [vmem:[%s318] sm:$0xf] %vm431, %v430
        %v433 = vpack.c.bf16 %v424, %v424
        %v435 = vunpack.c.l.b16 %v433
        %v436 = vpack.c.b16 %v435, %v435
        %437 = vrot.lane.b32.xlu0 %v436, 96
        %v438 = vpop.permute.xlu0 %437
        %440 = vst.msk [vmem:[%s325] sm:$0xf] %vm431, %v438
        %441 = vrot.lane.b32.xlu0 %v436, 64
        %v442 = vpop.permute.xlu0 %441
        %444 = vst.msk [vmem:[%s332] sm:$0xf] %vm431, %v442
        %v446 = vunpack.c.l.b16 %v430
        %v447 = vpack.c.b16 %v446, %v446
        %448 = vrot.lane.b32.xlu0 %v447, 120
        %v449 = vpop.permute.xlu0 %448
        %s451 = scalar_lea.vmem %s318, 4 [#allocation8]
        %452 = vst.msk [vmem:[%s451] sm:$0xf] %vm431, %v449
        %453 = vrot.lane.b32.xlu0 %v436, 88
        %v454 = vpop.permute.xlu0 %453
        %s456 = scalar_lea.vmem %s325, 4 [#allocation9]
        %457 = vst.msk [vmem:[%s456] sm:$0xf] %vm431, %v454
        %458 = vrot.lane.b32.xlu0 %v436, 56
        %v459 = vpop.permute.xlu0 %458
        %s461 = scalar_lea.vmem %s332, 4 [#allocation11]
        %462 = vst.msk [vmem:[%s461] sm:$0xf] %vm431, %v459
        %463 = vrot.lane.b32.xlu0 %v447, 112
        %v464 = vpop.permute.xlu0 %463
        %s466 = scalar_lea.vmem %s318, 8 [#allocation8]
        %467 = vst.msk [vmem:[%s466] sm:$0xf] %vm431, %v464
        %468 = vrot.lane.b32.xlu0 %v436, 80
        %v469 = vpop.permute.xlu0 %468
        %s471 = scalar_lea.vmem %s325, 8 [#allocation9]
        %472 = vst.msk [vmem:[%s471] sm:$0xf] %vm431, %v469
        %473 = vrot.lane.b32.xlu0 %v436, 48
        %v474 = vpop.permute.xlu0 %473
        %s476 = scalar_lea.vmem %s332, 8 [#allocation11]
        %477 = vst.msk [vmem:[%s476] sm:$0xf] %vm431, %v474
        %478 = vrot.lane.b32.xlu0 %v447, 104
        %v479 = vpop.permute.xlu0 %478
        %s481 = scalar_lea.vmem %s318, 12 [#allocation8]
        %482 = vst.msk [vmem:[%s481] sm:$0xf] %vm431, %v479
        %483 = vrot.lane.b32.xlu0 %v436, 72
        %v484 = vpop.permute.xlu0 %483
        %s486 = scalar_lea.vmem %s325, 12 [#allocation9]
        %487 = vst.msk [vmem:[%s486] sm:$0xf] %vm431, %v484
        %488 = vrot.lane.b32.xlu0 %v436, 40
        %v489 = vpop.permute.xlu0 %488
        %s491 = scalar_lea.vmem %s332, 12 [#allocation11]
        %492 = vst.msk [vmem:[%s491] sm:$0xf] %vm431, %v489
        %s493 = sand.u32 %s141, 1
        %s494 = scalar_lea.sflag [#allocation4], %s493
        %s495 = sand.u32 %s141, 1
        %s496 = smul.addr %s495, 16
        %s497 = scalar_lea.vmem [#allocation8], %s496
        %s498 = sand.u32 %s28, 1
        %s499 = scalar_lea.sflag [#allocation10], %s498
        %s500 = sand.u32 %s169, 1
        %s501 = smul.addr %s500, 16
        %s502 = scalar_lea.vmem [#allocation9], %s501
        %s503 = sand.u32 %s28, 1
        %s504 = scalar_lea.sflag [#allocation10], %s503
        %s505 = sand.u32 %s197, 1
        %s506 = smul.addr %s505, 16
        %s507 = scalar_lea.vmem [#allocation11], %s506
        // Predicated region
        $region49: #{tpu_custom_call.1} parent=35 // pred_check
          %p508 = pneg %p151
        $region50: #{tpu_custom_call.1} parent=35 // pred_check_branch
          %510 = sbr.rel (%p508) target = $region52
        $region51: #{tpu_custom_call.1} parent=35 // pred_region
          %s512 = ssub.s32 256, 256
          %513 = vsyncadd %s494, %s512
          %s514 = smul.addr %s32, 4
          %s515 = sadd.s32 %s33, %s514
          %s516 = smul.addr %s515, 64
          %s517 = scalar_lea.hbm %s4, %s516
          %s518 = sshll.u32 %s497, 4
          %s519 = int_to_ptr.vmem [resolvable:$true] %s518
          %524 = dma.vmem_to_hbm [thread:$0]  %s519, 256, %s517, %s494, 64, 64, 4
        $region52: #{tpu_custom_call.1} parent=35 // pred_fallthru
          _
        // Predicated region
        $region53: #{tpu_custom_call.1} parent=35 // pred_check
          %p525 = pneg %p179
        $region54: #{tpu_custom_call.1} parent=35 // pred_check_branch
          %527 = sbr.rel (%p525) target = $region56
        $region55: #{tpu_custom_call.1} parent=35 // pred_region
          %s529 = ssub.s32 256, 256
          %530 = vsyncadd %s499, %s529
          %s531 = smul.addr %s32, 4
          %s532 = sadd.s32 %s33, %s531
          %s533 = smul.addr %s532, 64
          %s534 = scalar_lea.hbm %s5, %s533
          %s535 = sshll.u32 %s502, 4
          %s536 = int_to_ptr.vmem [resolvable:$true] %s535
          %541 = dma.vmem_to_hbm [thread:$0]  %s536, 256, %s534, %s499, 64, 64, 4
        $region56: #{tpu_custom_call.1} parent=35 // pred_fallthru
          _
        // Predicated region
        $region57: #{tpu_custom_call.1} parent=35 // pred_check
          %p542 = pneg %p207
        $region58: #{tpu_custom_call.1} parent=35 // pred_check_branch
          %544 = sbr.rel (%p542) target = $region60
        $region59: #{tpu_custom_call.1} parent=35 // pred_region
          %s546 = ssub.s32 256, 256
          %547 = vsyncadd %s504, %s546
          %s548 = smul.addr %s32, 4
          %s549 = sadd.s32 %s33, %s548
          %s550 = smul.addr %s549, 64
          %s551 = scalar_lea.hbm %s6, %s550
          %s552 = sshll.u32 %s507, 4
          %s553 = int_to_ptr.vmem [resolvable:$true] %s552
          %558 = dma.vmem_to_hbm [thread:$0]  %s553, 256, %s551, %s504, 64, 64, 4
        $region60: #{tpu_custom_call.1} parent=35 // pred_fallthru
          _
      $region36: #{tpu_custom_call.1} parent=5 // pred_fallthru
        _
      %p559 = scmp.le.s32.totalorder 2, %s23
      // Predicated region
      $region61: #{tpu_custom_call.1} parent=5 // pred_check
        %p560 = pneg %p559
      $region62: #{tpu_custom_call.1} parent=5 // pred_check_branch
        %562 = sbr.rel (%p560) target = $region64
      $region63: #{tpu_custom_call.1} parent=5 // pred_region
        %s563 = ssub.s32 %s23, 2
        // Predicated region
        $region65: #{tpu_custom_call.1} parent=63 // pred_check
          %p564 = pneg %p157
        $region66: #{tpu_custom_call.1} parent=63 // pred_check_branch
          %566 = sbr.rel (%p564) target = $region68
        $region67: #{tpu_custom_call.1} parent=63 // pred_region
          %s567 = sand.u32 %s142, 1
          %s568 = scalar_lea.sflag [#allocation4], %s567
          %s569 = sand.u32 %s142, 1
          %s570 = smul.addr %s569, 16
          %s571 = scalar_lea.vmem [#allocation8], %s570
          %572 = dma.done %s568, 256
        $region68: #{tpu_custom_call.1} parent=63 // pred_fallthru
          _
        // Predicated region
        $region69: #{tpu_custom_call.1} parent=63 // pred_check
          %p573 = pneg %p185
        $region70: #{tpu_custom_call.1} parent=63 // pred_check_branch
          %575 = sbr.rel (%p573) target = $region72
        $region71: #{tpu_custom_call.1} parent=63 // pred_region
          %s576 = sand.u32 %s29, 1
          %s577 = scalar_lea.sflag [#allocation10], %s576
          %s578 = sand.u32 %s170, 1
          %s579 = smul.addr %s578, 16
          %s580 = scalar_lea.vmem [#allocation9], %s579
          %581 = dma.done %s577, 256
        $region72: #{tpu_custom_call.1} parent=63 // pred_fallthru
          _
        // Predicated region
        $region73: #{tpu_custom_call.1} parent=63 // pred_check
          %p582 = pneg %p213
        $region74: #{tpu_custom_call.1} parent=63 // pred_check_branch
          %584 = sbr.rel (%p582) target = $region76
        $region75: #{tpu_custom_call.1} parent=63 // pred_region
          %s585 = sand.u32 %s29, 1
          %s586 = scalar_lea.sflag [#allocation10], %s585
          %s587 = sand.u32 %s198, 1
          %s588 = smul.addr %s587, 16
          %s589 = scalar_lea.vmem [#allocation11], %s588
          %590 = dma.done %s586, 256
        $region76: #{tpu_custom_call.1} parent=63 // pred_fallthru
          _
      $region64: #{tpu_custom_call.1} parent=5 // pred_fallthru
        _
    $region6: #{tpu_custom_call.1} parent=1 // loop_footer
      %s27 = sadd.s32 1, %s23
    $region7: #{tpu_custom_call.1} parent=1 // loop_footer_branch
      %22 = sbr.rel target = $region3
    $region8: #{tpu_custom_call.1} parent=1 // loop_exit
      _
    %591 = vsyncpa [#allocation3], 1
    %s592 = scalar_lea.sflag [#allocation3], 1
    %593 = vsyncpa %s592, 1
    %594 = vsyncpa [#allocation6], 1
    %595 = vsyncpa [#allocation4], 1
    %s596 = scalar_lea.sflag [#allocation4], 1
    %597 = vsyncpa %s596, 1
    %598 = vsyncpa [#allocation10], 1
    %s599 = scalar_lea.sflag [#allocation10], 1
    %600 = vsyncpa %s599, 1

</llo_original>
